<compile_context>
chip_gen: v5e
topology: v5e:2x2
jax: 0.10.0
libtpu: 0.0.40
codegen_flags: <defaults>
</compile_context>

<pallas_src>
import jax
import jax.numpy as jnp
import numpy as np
from jax.experimental import pallas as pl
from jax.experimental.pallas import tpu as pltpu

LN_EPS = 1e-5   # PyTorch nn.LayerNorm default
LANE = 128


def _round_up(x, m):
    return ((x + m - 1) // m) * m


# ---------------- fused Pallas kernel ----------------

def _make_fused_dqnet_kernel(n_layers):
    """Kernel over one batch tile: full MLP stack + padded value head.

    Ref order: x, (w_i, consts_i) * n_layers, w_value, b_value, out.
    consts_i is a (3, d) f32 array holding [bias; gamma; beta].
    """
    def kernel(*refs):
        x_ref = refs[0]
        o_ref = refs[-1]

        h = x_ref[...].astype(jnp.bfloat16)                 # (TB, n_in_pad)
        for i in range(n_layers):
            w_ref = refs[1 + 2 * i]
            c_ref = refs[2 + 2 * i]
            w = w_ref[...]                                  # (d_in, d_out) bf16
            c = c_ref[...]                                  # (3, d_out) f32
            y = jnp.dot(h, w, preferred_element_type=jnp.float32) + c[0:1, :]
            # LayerNorm (biased variance, matches nn.LayerNorm), f32 stats.
            # var = E[y^2] - mean^2: the two reductions are independent and we
            # avoid a separate (y - mean) full-tile pass.
            mean = jnp.mean(y, axis=-1, keepdims=True)
            mean_sq = jnp.mean(y * y, axis=-1, keepdims=True)
            var = mean_sq - mean * mean
            y = (y - mean) * jax.lax.rsqrt(var + LN_EPS)
            y = y * c[1:2, :] + c[2:3, :]
            # Fused ReLU + bf16 cast: next layer's dot consumes h directly.
            h = jnp.maximum(y, 0.0).astype(jnp.bfloat16)

        wv = refs[1 + 2 * n_layers][...]                    # (d_last, 128) bf16
        bv = refs[2 + 2 * n_layers][...]                    # (1, 128) f32
        q = jnp.dot(h, wv, preferred_element_type=jnp.float32)
        o_ref[...] = (q + bv).astype(o_ref.dtype)           # lane-dense store

    return kernel


# ---------------- wrapper ----------------

def _pick_tiling(B, max_tb=1024):
    """Pick (tb, padded_B).  Big tiles amortize per-step overhead; when the
    batch allows it, keep >= 2 parallel tiles so v7x's second TC has work."""
    tb = _round_up(min(max_tb, max(8, B)), 8)
    Bp = _round_up(B, tb)
    if Bp // tb == 1 and Bp >= 256 and Bp % 16 == 0:
        tb = Bp // 2
    return tb, Bp


def dqnet_forward(params, obs, *, tb=None):
    """Fused forward pass. Returns (B, n_act) Q-values (f32)."""
    B, n_obs = obs.shape
    layers = params["layers"]                  # list of (w_bf16, consts_f32)
    wv, bv = params["value_w"], params["value_b"]
    n_layers = len(layers)
    n_in_pad = layers[0][0].shape[0]           # lane-padded input width
    n_out_pad = wv.shape[1]

    if tb is None:
        tb, Bp = _pick_tiling(B)
    else:
        assert tb % 8 == 0, "tile must be a multiple of 8 sublanes"
        Bp = _round_up(B, tb)
    grid = (Bp // tb,)

    # Zero-pad batch to a tile multiple and features to the lane-padded width
    # of W0 (W0's padding rows are zero, so the extra columns contribute 0).
    obs_p = obs
    if Bp != B or n_in_pad != n_obs:
        obs_p = jnp.zeros((Bp, n_in_pad), obs.dtype).at[:B, :n_obs].set(obs)

    def resident(shape):
        # Constant block index across the batch grid -> stays in VMEM,
        # no per-tile re-DMA.
        return pl.BlockSpec(shape, lambda i: (0, 0))

    flat_inputs = [obs_p]
    in_specs = [pl.BlockSpec((tb, n_in_pad), lambda i: (i, 0))]
    for (w, c) in layers:
        flat_inputs += [w, c]
        in_specs += [resident(w.shape), resident(c.shape)]
    flat_inputs += [wv, bv]
    in_specs += [resident(wv.shape), resident(bv.shape)]

    out = pl.pallas_call(
        _make_fused_dqnet_kernel(n_layers),
        out_shape=jax.ShapeDtypeStruct((Bp, n_out_pad), jnp.float32),
        grid=grid,
        in_specs=in_specs,
        out_specs=pl.BlockSpec((tb, n_out_pad), lambda i: (i, 0)),
        compiler_params=pltpu.CompilerParams(
            dimension_semantics=("parallel",)),
    )(*flat_inputs)
    # TODO(synk): at very large batch, pack/bf16 the padded (B,128) head output
    # to cut the HBM writeback; at small B it is overhead-free to keep f32.
    return out[:B, : params["n_act"]]


# ---------------- parameter init (matches DqNet._init_weights) ----------------

def _init_linear(key, n_in, n_out):
    # Reference uses f = 1/sqrt(weight.size()[0]); PyTorch weight is
    # (n_out, n_in), so the bound is 1/sqrt(n_out) (fan_out), as in the spec.
    kw, kb = jax.random.split(key)
    bound = 1.0 / np.sqrt(n_out)
    w = jax.random.uniform(kw, (n_in, n_out), jnp.float32, -bound, bound)
    b = jax.random.uniform(kb, (n_out,), jnp.float32, -bound, bound)
    return w, b


def init_params(key, n_obs, fc_dims, n_act):
    keys = jax.random.split(key, len(fc_dims) + 1)
    dims = [n_obs] + list(fc_dims)
    layers = []
    for i, (din, dout) in enumerate(zip(dims[:-1], dims[1:])):
        w, b = _init_linear(keys[i], din, dout)
        if i == 0:
            # Lane-pad the input dimension of the first layer with zero rows.
            din_pad = _round_up(max(din, LANE), LANE)
            w = jnp.zeros((din_pad, dout), jnp.float32).at[:din, :].set(w)
        consts = jnp.stack([
            b,                                   # bias
            jnp.ones((dout,), jnp.float32),      # LayerNorm gamma
            jnp.zeros((dout,), jnp.float32),     # LayerNorm beta
        ], axis=0)                               # (3, dout) f32
        layers.append((w.astype(jnp.bfloat16), consts))

    wv, bv = _init_linear(keys[-1], fc_dims[-1], n_act)
    n_pad = _round_up(max(n_act, LANE), LANE)
    wv_pad = jnp.zeros((fc_dims[-1], n_pad), jnp.float32).at[:, :n_act].set(wv)
    bv_pad = jnp.zeros((1, n_pad), jnp.float32).at[:, :n_act].set(
        bv.reshape(1, -1))
    return {
        "layers": layers,
        "value_w": wv_pad.astype(jnp.bfloat16),   # lane-dense padded head
        "value_b": bv_pad,
        "n_act": n_act,
    }


# ---------------- pure-JAX reference (same numerics as the kernel) ----------------

def ref_forward(params, obs):
    n_in_pad = params["layers"][0][0].shape[0]
    h = jnp.zeros((obs.shape[0], n_in_pad), obs.dtype).at[:, :obs.shape[1]].set(obs)
    h = h.astype(jnp.bfloat16)
    for (w, c) in params["layers"]:
        y = jnp.dot(h, w, preferred_element_type=jnp.float32) + c[0:1, :]
        m = jnp.mean(y, axis=-1, keepdims=True)
        v = jnp.mean((y - m) ** 2, axis=-1, keepdims=True)   # centered form
        y = (y - m) * jax.lax.rsqrt(v + LN_EPS) * c[1:2, :] + c[2:3, :]
        h = jnp.maximum(y, 0.0).astype(jnp.bfloat16)
    q = jnp.dot(h, params["value_w"],
                preferred_element_type=jnp.float32) + params["value_b"]
    return q[:, : params["n_act"]]


if __name__ == "__main__":
    key = jax.random.PRNGKey(0)
    kp, kx = jax.random.split(key)

    # Small shapes; n_obs and batch deliberately not lane/tile aligned to
    # exercise the padding paths.  Hidden dims stay MXU/lane friendly.
    B, N_OBS, N_ACT = 200, 17, 8
    FC_DIMS = [256, 256]

    params = init_params(kp, N_OBS, FC_DIMS, N_ACT)
    obs = jax.random.normal(kx, (B, N_OBS), jnp.float32)

    q = dqnet_forward(params, obs)
    q = jax.block_until_ready(q)

    q_ref = ref_forward(params, obs)
    np.testing.assert_allclose(np.asarray(q), np.asarray(q_ref),
                               rtol=2e-2, atol=2e-2)
    assert q.shape == (B, N_ACT)

    # TODO(synk): nn.MSELoss / the Adam optimizer from the reference are
    # training-time components and are not part of the forward pass.
    print("KERNEL_OK")
</pallas_src>

<mosaic_0001>
module attributes {stable_mosaic.version = 11 : i64} {
  func.func @kernel(%arg0: i32, %arg1: memref<200x128xf32, #tpu.memory_space<vmem>>, %arg2: memref<128x256xbf16, #tpu.memory_space<vmem>>, %arg3: memref<3x256xf32, #tpu.memory_space<vmem>>, %arg4: memref<256x256xbf16, #tpu.memory_space<vmem>>, %arg5: memref<3x256xf32, #tpu.memory_space<vmem>>, %arg6: memref<256x128xbf16, #tpu.memory_space<vmem>>, %arg7: memref<1x128xf32, #tpu.memory_space<vmem>>, %arg8: memref<200x128xf32, #tpu.memory_space<vmem>>) attributes {dimension_semantics = [#tpu.dimension_semantics<parallel>], iteration_bounds = array<i64: 1>, scalar_prefetch = 0 : i64, scratch_operands = 0 : i64, tpu.core_type = #tpu.core_type<tc>, window_params = [{transform_indices = @transform_0, window_bounds = array<i64: 200, 128>}, {pipeline_mode = #tpu.pipeline_mode<synchronous>, transform_indices = @transform_1, window_bounds = array<i64: 128, 256>}, {pipeline_mode = #tpu.pipeline_mode<synchronous>, transform_indices = @transform_2, window_bounds = array<i64: 3, 256>}, {pipeline_mode = #tpu.pipeline_mode<synchronous>, transform_indices = @transform_3, window_bounds = array<i64: 256, 256>}, {pipeline_mode = #tpu.pipeline_mode<synchronous>, transform_indices = @transform_4, window_bounds = array<i64: 3, 256>}, {pipeline_mode = #tpu.pipeline_mode<synchronous>, transform_indices = @transform_5, window_bounds = array<i64: 256, 128>}, {pipeline_mode = #tpu.pipeline_mode<synchronous>, transform_indices = @transform_6, window_bounds = array<i64: 1, 128>}, {transform_indices = @transform_7, window_bounds = array<i64: 200, 128>}]} {
    %c0 = arith.constant 0 : index
    %c0_0 = arith.constant 0 : index
    %0 = vector.load %arg1[%c0, %c0_0] : memref<200x128xf32, #tpu.memory_space<vmem>>, vector<200x128xf32>
    %1 = arith.truncf %0 : vector<200x128xf32> to vector<200x128xbf16>
    %c0_1 = arith.constant 0 : index
    %c0_2 = arith.constant 0 : index
    %2 = vector.load %arg2[%c0_1, %c0_2] : memref<128x256xbf16, #tpu.memory_space<vmem>>, vector<128x256xbf16>
    %c0_3 = arith.constant 0 : index
    %c0_4 = arith.constant 0 : index
    %3 = vector.load %arg3[%c0_3, %c0_4] : memref<3x256xf32, #tpu.memory_space<vmem>>, vector<3x256xf32>
    %cst = arith.constant dense<0.000000e+00> : vector<200x256xf32>
    %4 = tpu.matmul %1, %2, %cst {dimension_numbers = #tpu.dot_dimension_numbers<[1], [0], [0], [1], [0, 0, 1, 1], [], []>} : vector<200x128xbf16>, vector<128x256xbf16>, vector<200x256xf32> -> vector<200x256xf32>
    %5 = vector.extract_strided_slice %3 {offsets = [0, 0], sizes = [1, 256], strides = [1, 1]} : vector<3x256xf32> to vector<1x256xf32>
    %6 = vector.broadcast %5 : vector<1x256xf32> to vector<200x256xf32>
    %7 = arith.addf %4, %6 : vector<200x256xf32>
    %cst_5 = arith.constant dense<0.000000e+00> : vector<200xf32>
    %8 = vector.multi_reduction <add>, %7, %cst_5 [1] : vector<200x256xf32> to vector<200xf32>
    %9 = vector.shape_cast %8 : vector<200xf32> to vector<200x1xf32>
    %cst_6 = arith.constant 2.560000e+02 : f32
    %10 = vector.broadcast %cst_6 : f32 to vector<200x1xf32>
    %11 = arith.divf %9, %10 : vector<200x1xf32>
    %12 = arith.mulf %7, %7 : vector<200x256xf32>
    %cst_7 = arith.constant dense<0.000000e+00> : vector<200xf32>
    %13 = vector.multi_reduction <add>, %12, %cst_7 [1] : vector<200x256xf32> to vector<200xf32>
    %14 = vector.shape_cast %13 : vector<200xf32> to vector<200x1xf32>
    %cst_8 = arith.constant 2.560000e+02 : f32
    %15 = vector.broadcast %cst_8 : f32 to vector<200x1xf32>
    %16 = arith.divf %14, %15 : vector<200x1xf32>
    %17 = arith.mulf %11, %11 : vector<200x1xf32>
    %18 = arith.subf %16, %17 : vector<200x1xf32>
    %19 = vector.broadcast %11 : vector<200x1xf32> to vector<200x256xf32>
    %20 = arith.subf %7, %19 : vector<200x256xf32>
    %cst_9 = arith.constant 9.99999974E-6 : f32
    %21 = vector.broadcast %cst_9 : f32 to vector<200x1xf32>
    %22 = arith.addf %18, %21 : vector<200x1xf32>
    %23 = math.rsqrt %22 : vector<200x1xf32>
    %24 = vector.broadcast %23 : vector<200x1xf32> to vector<200x256xf32>
    %25 = arith.mulf %20, %24 : vector<200x256xf32>
    %26 = vector.extract_strided_slice %3 {offsets = [1, 0], sizes = [1, 256], strides = [1, 1]} : vector<3x256xf32> to vector<1x256xf32>
    %27 = vector.broadcast %26 : vector<1x256xf32> to vector<200x256xf32>
    %28 = arith.mulf %25, %27 : vector<200x256xf32>
    %29 = vector.extract_strided_slice %3 {offsets = [2, 0], sizes = [1, 256], strides = [1, 1]} : vector<3x256xf32> to vector<1x256xf32>
    %30 = vector.broadcast %29 : vector<1x256xf32> to vector<200x256xf32>
    %31 = arith.addf %28, %30 : vector<200x256xf32>
    %cst_10 = arith.constant 0.000000e+00 : f32
    %32 = vector.broadcast %cst_10 : f32 to vector<200x256xf32>
    %33 = arith.maximumf %31, %32 : vector<200x256xf32>
    %34 = arith.truncf %33 : vector<200x256xf32> to vector<200x256xbf16>
    %c0_11 = arith.constant 0 : index
    %c0_12 = arith.constant 0 : index
    %35 = vector.load %arg4[%c0_11, %c0_12] : memref<256x256xbf16, #tpu.memory_space<vmem>>, vector<256x256xbf16>
    %c0_13 = arith.constant 0 : index
    %c0_14 = arith.constant 0 : index
    %36 = vector.load %arg5[%c0_13, %c0_14] : memref<3x256xf32, #tpu.memory_space<vmem>>, vector<3x256xf32>
    %cst_15 = arith.constant dense<0.000000e+00> : vector<200x256xf32>
    %37 = tpu.matmul %34, %35, %cst_15 {dimension_numbers = #tpu.dot_dimension_numbers<[1], [0], [0], [1], [0, 0, 1, 1], [], []>} : vector<200x256xbf16>, vector<256x256xbf16>, vector<200x256xf32> -> vector<200x256xf32>
    %38 = vector.extract_strided_slice %36 {offsets = [0, 0], sizes = [1, 256], strides = [1, 1]} : vector<3x256xf32> to vector<1x256xf32>
    %39 = vector.broadcast %38 : vector<1x256xf32> to vector<200x256xf32>
    %40 = arith.addf %37, %39 : vector<200x256xf32>
    %cst_16 = arith.constant dense<0.000000e+00> : vector<200xf32>
    %41 = vector.multi_reduction <add>, %40, %cst_16 [1] : vector<200x256xf32> to vector<200xf32>
    %42 = vector.shape_cast %41 : vector<200xf32> to vector<200x1xf32>
    %cst_17 = arith.constant 2.560000e+02 : f32
    %43 = vector.broadcast %cst_17 : f32 to vector<200x1xf32>
    %44 = arith.divf %42, %43 : vector<200x1xf32>
    %45 = arith.mulf %40, %40 : vector<200x256xf32>
    %cst_18 = arith.constant dense<0.000000e+00> : vector<200xf32>
    %46 = vector.multi_reduction <add>, %45, %cst_18 [1] : vector<200x256xf32> to vector<200xf32>
    %47 = vector.shape_cast %46 : vector<200xf32> to vector<200x1xf32>
    %cst_19 = arith.constant 2.560000e+02 : f32
    %48 = vector.broadcast %cst_19 : f32 to vector<200x1xf32>
    %49 = arith.divf %47, %48 : vector<200x1xf32>
    %50 = arith.mulf %44, %44 : vector<200x1xf32>
    %51 = arith.subf %49, %50 : vector<200x1xf32>
    %52 = vector.broadcast %44 : vector<200x1xf32> to vector<200x256xf32>
    %53 = arith.subf %40, %52 : vector<200x256xf32>
    %cst_20 = arith.constant 9.99999974E-6 : f32
    %54 = vector.broadcast %cst_20 : f32 to vector<200x1xf32>
    %55 = arith.addf %51, %54 : vector<200x1xf32>
    %56 = math.rsqrt %55 : vector<200x1xf32>
    %57 = vector.broadcast %56 : vector<200x1xf32> to vector<200x256xf32>
    %58 = arith.mulf %53, %57 : vector<200x256xf32>
    %59 = vector.extract_strided_slice %36 {offsets = [1, 0], sizes = [1, 256], strides = [1, 1]} : vector<3x256xf32> to vector<1x256xf32>
    %60 = vector.broadcast %59 : vector<1x256xf32> to vector<200x256xf32>
    %61 = arith.mulf %58, %60 : vector<200x256xf32>
    %62 = vector.extract_strided_slice %36 {offsets = [2, 0], sizes = [1, 256], strides = [1, 1]} : vector<3x256xf32> to vector<1x256xf32>
    %63 = vector.broadcast %62 : vector<1x256xf32> to vector<200x256xf32>
    %64 = arith.addf %61, %63 : vector<200x256xf32>
    %cst_21 = arith.constant 0.000000e+00 : f32
    %65 = vector.broadcast %cst_21 : f32 to vector<200x256xf32>
    %66 = arith.maximumf %64, %65 : vector<200x256xf32>
    %67 = arith.truncf %66 : vector<200x256xf32> to vector<200x256xbf16>
    %c0_22 = arith.constant 0 : index
    %c0_23 = arith.constant 0 : index
    %68 = vector.load %arg6[%c0_22, %c0_23] : memref<256x128xbf16, #tpu.memory_space<vmem>>, vector<256x128xbf16>
    %c0_24 = arith.constant 0 : index
    %c0_25 = arith.constant 0 : index
    %69 = vector.load %arg7[%c0_24, %c0_25] : memref<1x128xf32, #tpu.memory_space<vmem>>, vector<1x128xf32>
    %cst_26 = arith.constant dense<0.000000e+00> : vector<200x128xf32>
    %70 = tpu.matmul %67, %68, %cst_26 {dimension_numbers = #tpu.dot_dimension_numbers<[1], [0], [0], [1], [0, 0, 1, 1], [], []>} : vector<200x256xbf16>, vector<256x128xbf16>, vector<200x128xf32> -> vector<200x128xf32>
    %71 = vector.broadcast %69 : vector<1x128xf32> to vector<200x128xf32>
    %72 = arith.addf %70, %71 : vector<200x128xf32>
    %c0_27 = arith.constant 0 : index
    %c0_28 = arith.constant 0 : index
    %73 = vector.load %arg8[%c0_27, %c0_28] : memref<200x128xf32, #tpu.memory_space<vmem>>, vector<200x128xf32>
    tpu.vector_store %arg8[%c0_27, %c0_28], %72 {strides = array<i32>} : memref<200x128xf32, #tpu.memory_space<vmem>>, vector<200x128xf32>,
    return
  }
  func.func @transform_0(%arg0: i32) -> (i32, i32) {
    %c0_i32 = arith.constant 0 : i32
    %c0_i32_0 = arith.constant 0 : i32
    return %arg0, %c0_i32 : i32, i32
  }
  func.func @transform_1(%arg0: i32) -> (i32, i32) {
    %c0_i32 = arith.constant 0 : i32
    %c0_i32_0 = arith.constant 0 : i32
    %c0_i32_1 = arith.constant 0 : i32
    return %c0_i32, %c0_i32_0 : i32, i32
  }
  func.func @transform_2(%arg0: i32) -> (i32, i32) {
    %c0_i32 = arith.constant 0 : i32
    %c0_i32_0 = arith.constant 0 : i32
    %c0_i32_1 = arith.constant 0 : i32
    return %c0_i32, %c0_i32_0 : i32, i32
  }
  func.func @transform_3(%arg0: i32) -> (i32, i32) {
    %c0_i32 = arith.constant 0 : i32
    %c0_i32_0 = arith.constant 0 : i32
    %c0_i32_1 = arith.constant 0 : i32
    return %c0_i32, %c0_i32_0 : i32, i32
  }
  func.func @transform_4(%arg0: i32) -> (i32, i32) {
    %c0_i32 = arith.constant 0 : i32
    %c0_i32_0 = arith.constant 0 : i32
    %c0_i32_1 = arith.constant 0 : i32
    return %c0_i32, %c0_i32_0 : i32, i32
  }
  func.func @transform_5(%arg0: i32) -> (i32, i32) {
    %c0_i32 = arith.constant 0 : i32
    %c0_i32_0 = arith.constant 0 : i32
    %c0_i32_1 = arith.constant 0 : i32
    return %c0_i32, %c0_i32_0 : i32, i32
  }
  func.func @transform_6(%arg0: i32) -> (i32, i32) {
    %c0_i32 = arith.constant 0 : i32
    %c0_i32_0 = arith.constant 0 : i32
    %c0_i32_1 = arith.constant 0 : i32
    return %c0_i32, %c0_i32_0 : i32, i32
  }
  func.func @transform_7(%arg0: i32) -> (i32, i32) {
    %c0_i32 = arith.constant 0 : i32
    %c0_i32_0 = arith.constant 0 : i32
    return %arg0, %c0_i32 : i32, i32
  }
}

</mosaic_0001>

<llo_original>
// kernel: tpu_custom_call.1
$region0: #{tpu_custom_call.1}
  #allocation0 [shape = 'u32[]', space=smem, size = 0x4, offset = 0x4, fixed_abs, tag = 'smem constant byte address 0x4 - core index']
  #allocation1 [shape = 'u32[72,128]{1,0:T(1,128)}', space=vmem, size = 0x9000, scoped, tag = 'internal scratch']
  %s0 = inlined_call_operand.hbm [shape: f32[200,128], index: 0, kind: input, shape index: {}]
  %s1 = inlined_call_operand.hbm [shape: bf16[128,256], index: 1, kind: input, shape index: {}]
  %s2 = inlined_call_operand.hbm [shape: f32[3,256], index: 2, kind: input, shape index: {}]
  %s3 = inlined_call_operand.hbm [shape: bf16[256,256], index: 3, kind: input, shape index: {}]
  %s4 = inlined_call_operand.hbm [shape: f32[3,256], index: 4, kind: input, shape index: {}]
  %s5 = inlined_call_operand.hbm [shape: bf16[256,128], index: 5, kind: input, shape index: {}]
  %s6 = inlined_call_operand.vmem [shape: f32[1,128], index: 6, kind: input, shape index: {}]
  %s7 = inlined_call_operand.hbm [shape: f32[200,128], index: 7, kind: output, shape index: {}]
  %s8 = sld [smem:[#allocation0]]
  $region62: #{tpu_custom_call.1} parent=0
    _
  %s10 = ssub.s32 1, %s8
  %s11 = scalar_select 0, %s10, %s8
  $region1: #{tpu_custom_call.1} parent=0
    #allocation2 [shape = 'u8[102400]{0}', space=vmem, size = 0x19000, scoped, tag = 'input window, operand 0, single buffered']
    #allocation3 [shape = 's32[1]{0}', space=sflag, size = 0x4, scoped, tag = 'scoped memory for tpu_custom_call.1']
    #allocation4 [shape = 's32[1]{0}', space=sflag, size = 0x4, scoped, tag = 'scoped memory for tpu_custom_call.1']
    #allocation5 [shape = 'u8[65536]{0}', space=vmem, size = 0x10000, scoped, tag = 'input window, operand 1, single buffered']
    #allocation6 [shape = 's32[1]{0}', space=sflag, size = 0x4, scoped, tag = 'scoped memory for tpu_custom_call.1']
    #allocation7 [shape = 'u8[4096]{0}', space=vmem, size = 0x1000, scoped, tag = 'input window, operand 2, single buffered']
    #allocation8 [shape = 'u8[131072]{0}', space=vmem, size = 0x20000, scoped, tag = 'input window, operand 3, single buffered']
    #allocation9 [shape = 's32[1]{0}', space=sflag, size = 0x4, scoped, tag = 'scoped memory for tpu_custom_call.1']
    #allocation10 [shape = 'u8[4096]{0}', space=vmem, size = 0x1000, scoped, tag = 'input window, operand 4, single buffered']
    #allocation11 [shape = 'u8[65536]{0}', space=vmem, size = 0x10000, scoped, tag = 'input window, operand 5, single buffered']
    #allocation12 [shape = 's32[1]{0}', space=sflag, size = 0x4, scoped, tag = 'scoped memory for tpu_custom_call.1']
    #allocation13 [shape = 'u8[102400]{0}', space=vmem, size = 0x19000, scoped, tag = 'output window, operand 0, single buffered']
    %12 = vsyncpa [#allocation3], 0
    %13 = vsyncpa [#allocation6], 0
    %14 = vsyncpa [#allocation9], 0
    %15 = vsyncpa [#allocation12], 0
    %16 = vsyncpa [#allocation4], 0
    // Predicated region
    $region2: #{tpu_custom_call.1} parent=1 // pred_check
      _
    $region3: #{tpu_custom_call.1} parent=1 // pred_check_branch
      %18 = sbr.rel (0) target = $region5
    $region4: #{tpu_custom_call.1} parent=1 // pred_region
      %20 = vsyncadd [#allocation3], 0
      %s21 = sshll.u32 %s0, 4
      %s22 = int_to_ptr.hbm [resolvable:$true] %s21
      %s23 = sshll.u32 [#allocation2], 4
      %s24 = int_to_ptr.vmem [resolvable:$true] %s23
      %29 = dma.hbm_to_vmem [thread:$0]  %s22, 3200, %s24, [#allocation3], 128, 128, 8
    $region5: #{tpu_custom_call.1} parent=1 // pred_fallthru
      _
    // Predicated region
    $region6: #{tpu_custom_call.1} parent=1 // pred_check
      _
    $region7: #{tpu_custom_call.1} parent=1 // pred_check_branch
      %31 = sbr.rel (0) target = $region9
    $region8: #{tpu_custom_call.1} parent=1 // pred_region
      %33 = vsyncadd [#allocation6], 0
      %s34 = sshll.u32 %s1, 4
      %s35 = int_to_ptr.hbm [resolvable:$true] %s34
      %s36 = sshll.u32 [#allocation5], 4
      %s37 = int_to_ptr.vmem [resolvable:$true] %s36
      %42 = dma.hbm_to_vmem [thread:$0]  %s35, 2048, %s37, [#allocation6], 128, 128, 8
    $region9: #{tpu_custom_call.1} parent=1 // pred_fallthru
      _
    // Predicated region
    $region10: #{tpu_custom_call.1} parent=1 // pred_check
      _
    $region11: #{tpu_custom_call.1} parent=1 // pred_check_branch
      %44 = sbr.rel (0) target = $region13
    $region12: #{tpu_custom_call.1} parent=1 // pred_region
      %46 = vsyncadd [#allocation6], 0
      %s48 = sshll.u32 %s2, 4
      %s49 = int_to_ptr.hbm [resolvable:$true] %s48
      %s50 = sshll.u32 [#allocation7], 4
      %s51 = int_to_ptr.vmem [resolvable:$true] %s50
      %53 = dma.hbm_to_vmem [thread:$0]  %s49, 128, %s51, [#allocation6]
    $region13: #{tpu_custom_call.1} parent=1 // pred_fallthru
      _
    // Predicated region
    $region14: #{tpu_custom_call.1} parent=1 // pred_check
      _
    $region15: #{tpu_custom_call.1} parent=1 // pred_check_branch
      %55 = sbr.rel (0) target = $region17
    $region16: #{tpu_custom_call.1} parent=1 // pred_region
      %57 = vsyncadd [#allocation9], 0
      %s58 = sshll.u32 %s3, 4
      %s59 = int_to_ptr.hbm [resolvable:$true] %s58
      %s60 = sshll.u32 [#allocation8], 4
      %s61 = int_to_ptr.vmem [resolvable:$true] %s60
      %66 = dma.hbm_to_vmem [thread:$0]  %s59, 4096, %s61, [#allocation9], 128, 128, 8
    $region17: #{tpu_custom_call.1} parent=1 // pred_fallthru
      _
    // Predicated region
    $region18: #{tpu_custom_call.1} parent=1 // pred_check
      _
    $region19: #{tpu_custom_call.1} parent=1 // pred_check_branch
      %68 = sbr.rel (0) target = $region21
    $region20: #{tpu_custom_call.1} parent=1 // pred_region
      %70 = vsyncadd [#allocation9], 0
      %s72 = sshll.u32 %s4, 4
      %s73 = int_to_ptr.hbm [resolvable:$true] %s72
      %s74 = sshll.u32 [#allocation10], 4
      %s75 = int_to_ptr.vmem [resolvable:$true] %s74
      %77 = dma.hbm_to_vmem [thread:$0]  %s73, 128, %s75, [#allocation9]
    $region21: #{tpu_custom_call.1} parent=1 // pred_fallthru
      _
    // Predicated region
    $region22: #{tpu_custom_call.1} parent=1 // pred_check
      _
    $region23: #{tpu_custom_call.1} parent=1 // pred_check_branch
      %79 = sbr.rel (0) target = $region25
    $region24: #{tpu_custom_call.1} parent=1 // pred_region
      %81 = vsyncadd [#allocation12], 0
      %s82 = sshll.u32 %s5, 4
      %s83 = int_to_ptr.hbm [resolvable:$true] %s82
      %s84 = sshll.u32 [#allocation11], 4
      %s85 = int_to_ptr.vmem [resolvable:$true] %s84
      %90 = dma.hbm_to_vmem [thread:$0]  %s83, 2048, %s85, [#allocation12], 64, 64, 4
    $region25: #{tpu_custom_call.1} parent=1 // pred_fallthru
      _
    // Predicated region
    $region26: #{tpu_custom_call.1} parent=1 // pred_check
      _
    $region27: #{tpu_custom_call.1} parent=1 // pred_check_branch
      %92 = sbr.rel (0) target = $region29
    $region28: #{tpu_custom_call.1} parent=1 // pred_region
      _
    $region29: #{tpu_custom_call.1} parent=1 // pred_fallthru
      _
    // Predicated region
    $region30: #{tpu_custom_call.1} parent=1 // pred_check
      _
    $region31: #{tpu_custom_call.1} parent=1 // pred_check_branch
      %94 = sbr.rel (0) target = $region33
    $region32: #{tpu_custom_call.1} parent=1 // pred_region
      %96 = dma.done [#allocation3], 3200
    $region33: #{tpu_custom_call.1} parent=1 // pred_fallthru
      _
    // Predicated region
    $region34: #{tpu_custom_call.1} parent=1 // pred_check
      _
    $region35: #{tpu_custom_call.1} parent=1 // pred_check_branch
      %98 = sbr.rel (0) target = $region37
    $region36: #{tpu_custom_call.1} parent=1 // pred_region
      %100 = dma.done [#allocation6], 2048
    $region37: #{tpu_custom_call.1} parent=1 // pred_fallthru
      _
    // Predicated region
    $region38: #{tpu_custom_call.1} parent=1 // pred_check
      _
    $region39: #{tpu_custom_call.1} parent=1 // pred_check_branch
      %102 = sbr.rel (0) target = $region41
    $region40: #{tpu_custom_call.1} parent=1 // pred_region
      %104 = dma.done [#allocation6], 128
    $region41: #{tpu_custom_call.1} parent=1 // pred_fallthru
      _
    // Predicated region
    $region42: #{tpu_custom_call.1} parent=1 // pred_check
      _
    $region43: #{tpu_custom_call.1} parent=1 // pred_check_branch
      %106 = sbr.rel (0) target = $region45
    $region44: #{tpu_custom_call.1} parent=1 // pred_region
      %108 = dma.done [#allocation9], 4096
    $region45: #{tpu_custom_call.1} parent=1 // pred_fallthru
      _
    // Predicated region
    $region46: #{tpu_custom_call.1} parent=1 // pred_check
      _
    $region47: #{tpu_custom_call.1} parent=1 // pred_check_branch
      %110 = sbr.rel (0) target = $region49
    $region48: #{tpu_custom_call.1} parent=1 // pred_region
      %112 = dma.done [#allocation9], 128
    $region49: #{tpu_custom_call.1} parent=1 // pred_fallthru
      _
    // Predicated region
    $region50: #{tpu_custom_call.1} parent=1 // pred_check
      _
    $region51: #{tpu_custom_call.1} parent=1 // pred_check_branch
      %114 = sbr.rel (0) target = $region53
    $region52: #{tpu_custom_call.1} parent=1 // pred_region
      %116 = dma.done [#allocation12], 2048
    $region53: #{tpu_custom_call.1} parent=1 // pred_fallthru
      _
    %v117 = vld [vmem:[#allocation2] sm:$0xff]
    %v118 = vld [vmem:[#allocation2 + $0x8] sm:$0xff]
    %v119 = vld [vmem:[#allocation2 + $0x10] sm:$0xff]
    %v120 = vld [vmem:[#allocation2 + $0x18] sm:$0xff]
    %v121 = vld [vmem:[#allocation2 + $0x20] sm:$0xff]
    %v122 = vld [vmem:[#allocation2 + $0x28] sm:$0xff]
    %v123 = vld [vmem:[#allocation2 + $0x30] sm:$0xff]
    %v124 = vld [vmem:[#allocation2 + $0x38] sm:$0xff]
    %v125 = vld [vmem:[#allocation2 + $0x40] sm:$0xff]
    %v126 = vld [vmem:[#allocation2 + $0x48] sm:$0xff]
    %v127 = vld [vmem:[#allocation2 + $0x50] sm:$0xff]
    %v128 = vld [vmem:[#allocation2 + $0x58] sm:$0xff]
    %v129 = vld [vmem:[#allocation2 + $0x60] sm:$0xff]
    %v130 = vld [vmem:[#allocation2 + $0x68] sm:$0xff]
    %v131 = vld [vmem:[#allocation2 + $0x70] sm:$0xff]
    %v132 = vld [vmem:[#allocation2 + $0x78] sm:$0xff]
    %v133 = vld [vmem:[#allocation2 + $0x80] sm:$0xff]
    %v134 = vld [vmem:[#allocation2 + $0x88] sm:$0xff]
    %v135 = vld [vmem:[#allocation2 + $0x90] sm:$0xff]
    %v136 = vld [vmem:[#allocation2 + $0x98] sm:$0xff]
    %v137 = vld [vmem:[#allocation2 + $0xa0] sm:$0xff]
    %v138 = vld [vmem:[#allocation2 + $0xa8] sm:$0xff]
    %v139 = vld [vmem:[#allocation2 + $0xb0] sm:$0xff]
    %v140 = vld [vmem:[#allocation2 + $0xb8] sm:$0xff]
    %v141 = vld [vmem:[#allocation2 + $0xc0] sm:$0xff]
    %v142 = vpack.c.bf16 %v118, %v117
    %v143 = vpack.c.bf16 %v120, %v119
    %v144 = vpack.c.bf16 %v122, %v121
    %v145 = vpack.c.bf16 %v124, %v123
    %v146 = vpack.c.bf16 %v126, %v125
    %v147 = vpack.c.bf16 %v128, %v127
    %v148 = vpack.c.bf16 %v130, %v129
    %v149 = vpack.c.bf16 %v132, %v131
    %v150 = vpack.c.bf16 %v134, %v133
    %v151 = vpack.c.bf16 %v136, %v135
    %v152 = vpack.c.bf16 %v138, %v137
    %v153 = vpack.c.bf16 %v140, %v139
    %v154 = vpack.c.bf16 %v141, %v141
    %v155 = vld [vmem:[#allocation5] sm:$0xff]
    %v156 = vld [vmem:[#allocation5 + $0x8] sm:$0xff]
    %v157 = vld [vmem:[#allocation5 + $0x10] sm:$0xff]
    %v158 = vld [vmem:[#allocation5 + $0x18] sm:$0xff]
    %v159 = vld [vmem:[#allocation5 + $0x20] sm:$0xff]
    %v160 = vld [vmem:[#allocation5 + $0x28] sm:$0xff]
    %v161 = vld [vmem:[#allocation5 + $0x30] sm:$0xff]
    %v162 = vld [vmem:[#allocation5 + $0x38] sm:$0xff]
    %v163 = vld [vmem:[#allocation5 + $0x40] sm:$0xff]
    %v164 = vld [vmem:[#allocation5 + $0x48] sm:$0xff]
    %v165 = vld [vmem:[#allocation5 + $0x50] sm:$0xff]
    %v166 = vld [vmem:[#allocation5 + $0x58] sm:$0xff]
    %v167 = vld [vmem:[#allocation5 + $0x60] sm:$0xff]
    %v168 = vld [vmem:[#allocation5 + $0x68] sm:$0xff]
    %v169 = vld [vmem:[#allocation5 + $0x70] sm:$0xff]
    %v170 = vld [vmem:[#allocation5 + $0x78] sm:$0xff]
    %v171 = vld [vmem:[#allocation7] sm:$0x77]
    %v173 = vperm.slane %v171, 0
    %v174 = vperm.slane %v171, 4
    %v177 = vperm.slane %v173, 0
    %v178 = vperm.slane %v174, 0
    %v195 = vunpack.c.l.b16 %v155
    %v196 = vunpack.c.h.b16 %v155
    %v197 = vunpack.c.l.b16 %v156
    %v198 = vunpack.c.h.b16 %v156
    %v199 = vunpack.c.l.b16 %v157
    %v200 = vunpack.c.h.b16 %v157
    %v201 = vunpack.c.l.b16 %v158
    %v202 = vunpack.c.h.b16 %v158
    %v203 = vunpack.c.l.b16 %v159
    %v204 = vunpack.c.h.b16 %v159
    %v205 = vunpack.c.l.b16 %v160
    %v206 = vunpack.c.h.b16 %v160
    %v207 = vunpack.c.l.b16 %v161
    %v208 = vunpack.c.h.b16 %v161
    %v209 = vunpack.c.l.b16 %v162
    %v210 = vunpack.c.h.b16 %v162
    %v211 = vunpack.c.l.b16 %v163
    %v212 = vunpack.c.h.b16 %v163
    %v213 = vunpack.c.l.b16 %v164
    %v214 = vunpack.c.h.b16 %v164
    %v215 = vunpack.c.l.b16 %v165
    %v216 = vunpack.c.h.b16 %v165
    %v217 = vunpack.c.l.b16 %v166
    %v218 = vunpack.c.h.b16 %v166
    %v219 = vunpack.c.l.b16 %v167
    %v220 = vunpack.c.h.b16 %v167
    %v221 = vunpack.c.l.b16 %v168
    %v222 = vunpack.c.h.b16 %v168
    %v223 = vunpack.c.l.b16 %v169
    %v224 = vunpack.c.h.b16 %v169
    %v225 = vunpack.c.l.b16 %v170
    %v226 = vunpack.c.h.b16 %v170
    %v227 = vpack.c.b16 %v197, %v195
    %v228 = vpack.c.b16 %v198, %v196
    %v229 = vpack.c.b16 %v201, %v199
    %v230 = vpack.c.b16 %v202, %v200
    %v231 = vpack.c.b16 %v205, %v203
    %v232 = vpack.c.b16 %v206, %v204
    %v233 = vpack.c.b16 %v209, %v207
    %v234 = vpack.c.b16 %v210, %v208
    %v235 = vpack.c.b16 %v213, %v211
    %v236 = vpack.c.b16 %v214, %v212
    %v237 = vpack.c.b16 %v217, %v215
    %v238 = vpack.c.b16 %v218, %v216
    %v239 = vpack.c.b16 %v221, %v219
    %v240 = vpack.c.b16 %v222, %v220
    %v241 = vpack.c.b16 %v225, %v223
    %v242 = vpack.c.b16 %v226, %v224
    %259 = vmatpush.bf16.msra.mxu0 %v241
    %260 = vmatpush.bf16.msra.mxu0 %v239
    %261 = vmatpush.bf16.msra.mxu0 %v237
    %262 = vmatpush.bf16.msra.mxu0 %v235
    %263 = vmatpush.bf16.msra.mxu0 %v233
    %264 = vmatpush.bf16.msra.mxu0 %v231
    %265 = vmatpush.bf16.msra.mxu0 %v229
    %266 = vmatpush.bf16.msra.mxu0 %v227
    %267 = vmatmul.bf16.gmra.mxu0 %v142
    %v268 = vpop.f32.mrf.mxu0
    %v269 = vadd.f32 %v177, %v268
    %v270 = vpop.f32.mrf.mxu0
    %v271 = vadd.f32 %v177, %v270
    %272 = vmatmul.bf16.gmra.mxu0 %v143
    %v273 = vpop.f32.mrf.mxu0
    %v274 = vadd.f32 %v177, %v273
    %v275 = vpop.f32.mrf.mxu0
    %v276 = vadd.f32 %v177, %v275
    %277 = vmatmul.bf16.gmra.mxu0 %v144
    %v278 = vpop.f32.mrf.mxu0
    %v279 = vadd.f32 %v177, %v278
    %v280 = vpop.f32.mrf.mxu0
    %v281 = vadd.f32 %v177, %v280
    %282 = vmatmul.bf16.gmra.mxu0 %v145
    %v283 = vpop.f32.mrf.mxu0
    %v284 = vadd.f32 %v177, %v283
    %v285 = vpop.f32.mrf.mxu0
    %v286 = vadd.f32 %v177, %v285
    %287 = vmatmul.bf16.gmra.mxu0 %v146
    %v288 = vpop.f32.mrf.mxu0
    %v289 = vadd.f32 %v177, %v288
    %v290 = vpop.f32.mrf.mxu0
    %v291 = vadd.f32 %v177, %v290
    %292 = vmatmul.bf16.gmra.mxu0 %v147
    %v293 = vpop.f32.mrf.mxu0
    %v294 = vadd.f32 %v177, %v293
    %v295 = vpop.f32.mrf.mxu0
    %v296 = vadd.f32 %v177, %v295
    %297 = vmatmul.bf16.gmra.mxu0 %v148
    %v298 = vpop.f32.mrf.mxu0
    %v299 = vadd.f32 %v177, %v298
    %v300 = vpop.f32.mrf.mxu0
    %v301 = vadd.f32 %v177, %v300
    %302 = vmatmul.bf16.gmra.mxu0 %v149
    %v303 = vpop.f32.mrf.mxu0
    %v304 = vadd.f32 %v177, %v303
    %v305 = vpop.f32.mrf.mxu0
    %v306 = vadd.f32 %v177, %v305
    %307 = vmatmul.bf16.gmra.mxu0 %v150
    %v308 = vpop.f32.mrf.mxu0
    %v309 = vadd.f32 %v177, %v308
    %v310 = vpop.f32.mrf.mxu0
    %v311 = vadd.f32 %v177, %v310
    %312 = vmatmul.bf16.gmra.mxu0 %v151
    %v313 = vpop.f32.mrf.mxu0
    %v314 = vadd.f32 %v177, %v313
    %v315 = vpop.f32.mrf.mxu0
    %v316 = vadd.f32 %v177, %v315
    %317 = vmatmul.bf16.gmra.mxu0 %v152
    %v318 = vpop.f32.mrf.mxu0
    %v319 = vadd.f32 %v177, %v318
    %v320 = vpop.f32.mrf.mxu0
    %v321 = vadd.f32 %v177, %v320
    %322 = vmatmul.bf16.gmra.mxu0 %v153
    %v323 = vpop.f32.mrf.mxu0
    %v324 = vadd.f32 %v177, %v323
    %v325 = vpop.f32.mrf.mxu0
    %v326 = vadd.f32 %v177, %v325
    %327 = vmatmul.bf16.gmra.mxu0 %v154
    %v328 = vpop.f32.mrf.mxu0
    %v329 = vadd.f32 %v177, %v328
    %v330 = vpop.f32.mrf.mxu0
    %331 = vdwg.mxu0
    %332 = vmatpush.bf16.msra.mxu0 %v242
    %333 = vmatpush.bf16.msra.mxu0 %v240
    %334 = vmatpush.bf16.msra.mxu0 %v238
    %335 = vmatpush.bf16.msra.mxu0 %v236
    %336 = vmatpush.bf16.msra.mxu0 %v234
    %337 = vmatpush.bf16.msra.mxu0 %v232
    %338 = vmatpush.bf16.msra.mxu0 %v230
    %339 = vmatpush.bf16.msra.mxu0 %v228
    %340 = vmatmul.bf16.gmra.mxu0 %v142
    %v341 = vpop.f32.mrf.mxu0
    %v342 = vadd.f32 %v178, %v341
    %v343 = vpop.f32.mrf.mxu0
    %v344 = vadd.f32 %v178, %v343
    %345 = vmatmul.bf16.gmra.mxu0 %v143
    %v346 = vpop.f32.mrf.mxu0
    %v347 = vadd.f32 %v178, %v346
    %v348 = vpop.f32.mrf.mxu0
    %v349 = vadd.f32 %v178, %v348
    %350 = vmatmul.bf16.gmra.mxu0 %v144
    %v351 = vpop.f32.mrf.mxu0
    %v352 = vadd.f32 %v178, %v351
    %v353 = vpop.f32.mrf.mxu0
    %v354 = vadd.f32 %v178, %v353
    %355 = vmatmul.bf16.gmra.mxu0 %v145
    %v356 = vpop.f32.mrf.mxu0
    %v357 = vadd.f32 %v178, %v356
    %v358 = vpop.f32.mrf.mxu0
    %v359 = vadd.f32 %v178, %v358
    %360 = vmatmul.bf16.gmra.mxu0 %v146
    %v361 = vpop.f32.mrf.mxu0
    %v362 = vadd.f32 %v178, %v361
    %v363 = vpop.f32.mrf.mxu0
    %v364 = vadd.f32 %v178, %v363
    %365 = vmatmul.bf16.gmra.mxu0 %v147
    %v366 = vpop.f32.mrf.mxu0
    %v367 = vadd.f32 %v178, %v366
    %v368 = vpop.f32.mrf.mxu0
    %v369 = vadd.f32 %v178, %v368
    %370 = vmatmul.bf16.gmra.mxu0 %v148
    %v371 = vpop.f32.mrf.mxu0
    %v372 = vadd.f32 %v178, %v371
    %v373 = vpop.f32.mrf.mxu0
    %v374 = vadd.f32 %v178, %v373
    %375 = vmatmul.bf16.gmra.mxu0 %v149
    %v376 = vpop.f32.mrf.mxu0
    %v377 = vadd.f32 %v178, %v376
    %v378 = vpop.f32.mrf.mxu0
    %v379 = vadd.f32 %v178, %v378
    %380 = vmatmul.bf16.gmra.mxu0 %v150
    %v381 = vpop.f32.mrf.mxu0
    %v382 = vadd.f32 %v178, %v381
    %v383 = vpop.f32.mrf.mxu0
    %v384 = vadd.f32 %v178, %v383
    %385 = vmatmul.bf16.gmra.mxu0 %v151
    %v386 = vpop.f32.mrf.mxu0
    %v387 = vadd.f32 %v178, %v386
    %v388 = vpop.f32.mrf.mxu0
    %v389 = vadd.f32 %v178, %v388
    %390 = vmatmul.bf16.gmra.mxu0 %v152
    %v391 = vpop.f32.mrf.mxu0
    %v392 = vadd.f32 %v178, %v391
    %v393 = vpop.f32.mrf.mxu0
    %v394 = vadd.f32 %v178, %v393
    %395 = vmatmul.bf16.gmra.mxu0 %v153
    %v396 = vpop.f32.mrf.mxu0
    %v397 = vadd.f32 %v178, %v396
    %v398 = vpop.f32.mrf.mxu0
    %v399 = vadd.f32 %v178, %v398
    %400 = vmatmul.bf16.gmra.mxu0 %v154
    %v401 = vpop.f32.mrf.mxu0
    %v402 = vadd.f32 %v178, %v401
    %v403 = vpop.f32.mrf.mxu0
    %404 = vdwg.mxu0
    %v405 = vadd.f32 %v269, %v342
    %406 = vadd.xlane.f32.xlu0 %v405
    %v407 = vpop.xlane.xlu0 %406
    %v408 = vadd.f32 %v271, %v344
    %409 = vadd.xlane.f32.xlu0 %v408
    %v410 = vpop.xlane.xlu0 %409
    %v411 = vadd.f32 %v274, %v347
    %412 = vadd.xlane.f32.xlu0 %v411
    %v413 = vpop.xlane.xlu0 %412
    %v414 = vadd.f32 %v276, %v349
    %415 = vadd.xlane.f32.xlu0 %v414
    %v416 = vpop.xlane.xlu0 %415
    %v417 = vadd.f32 %v279, %v352
    %418 = vadd.xlane.f32.xlu0 %v417
    %v419 = vpop.xlane.xlu0 %418
    %v420 = vadd.f32 %v281, %v354
    %421 = vadd.xlane.f32.xlu0 %v420
    %v422 = vpop.xlane.xlu0 %421
    %v423 = vadd.f32 %v284, %v357
    %424 = vadd.xlane.f32.xlu0 %v423
    %v425 = vpop.xlane.xlu0 %424
    %v426 = vadd.f32 %v286, %v359
    %427 = vadd.xlane.f32.xlu0 %v426
    %v428 = vpop.xlane.xlu0 %427
    %v429 = vadd.f32 %v289, %v362
    %430 = vadd.xlane.f32.xlu0 %v429
    %v431 = vpop.xlane.xlu0 %430
    %v432 = vadd.f32 %v291, %v364
    %433 = vadd.xlane.f32.xlu0 %v432
    %v434 = vpop.xlane.xlu0 %433
    %v435 = vadd.f32 %v294, %v367
    %436 = vadd.xlane.f32.xlu0 %v435
    %v437 = vpop.xlane.xlu0 %436
    %v438 = vadd.f32 %v296, %v369
    %439 = vadd.xlane.f32.xlu0 %v438
    %v440 = vpop.xlane.xlu0 %439
    %v441 = vadd.f32 %v299, %v372
    %442 = vadd.xlane.f32.xlu0 %v441
    %v443 = vpop.xlane.xlu0 %442
    %v444 = vadd.f32 %v301, %v374
    %445 = vadd.xlane.f32.xlu0 %v444
    %v446 = vpop.xlane.xlu0 %445
    %v447 = vadd.f32 %v304, %v377
    %448 = vadd.xlane.f32.xlu0 %v447
    %v449 = vpop.xlane.xlu0 %448
    %v450 = vadd.f32 %v306, %v379
    %451 = vadd.xlane.f32.xlu0 %v450
    %v452 = vpop.xlane.xlu0 %451
    %v453 = vadd.f32 %v309, %v382
    %454 = vadd.xlane.f32.xlu0 %v453
    %v455 = vpop.xlane.xlu0 %454
    %v456 = vadd.f32 %v311, %v384
    %457 = vadd.xlane.f32.xlu0 %v456
    %v458 = vpop.xlane.xlu0 %457
    %v459 = vadd.f32 %v314, %v387
    %460 = vadd.xlane.f32.xlu0 %v459
    %v461 = vpop.xlane.xlu0 %460
    %v462 = vadd.f32 %v316, %v389
    %463 = vadd.xlane.f32.xlu0 %v462
    %v464 = vpop.xlane.xlu0 %463
    %v465 = vadd.f32 %v319, %v392
    %466 = vadd.xlane.f32.xlu0 %v465
    %v467 = vpop.xlane.xlu0 %466
    %v468 = vadd.f32 %v321, %v394
    %469 = vadd.xlane.f32.xlu0 %v468
    %v470 = vpop.xlane.xlu0 %469
    %v471 = vadd.f32 %v324, %v397
    %472 = vadd.xlane.f32.xlu0 %v471
    %v473 = vpop.xlane.xlu0 %472
    %v474 = vadd.f32 %v326, %v399
    %475 = vadd.xlane.f32.xlu0 %v474
    %v476 = vpop.xlane.xlu0 %475
    %v477 = vadd.f32 %v329, %v402
    %478 = vadd.xlane.f32.xlu0 %v477
    %v479 = vpop.xlane.xlu0 %478
    %v480 = vrcp.pop 256.0
    %v481 = vmul.f32 256.0, %v480
    %v482 = vsub.f32 1.0, %v481
    %v483 = vmul.f32 %v480, %v482
    %v484 = vadd.f32 %v480, %v483
    %vm485 = vweird.f32 %v480
    %v486 = vsel %vm485, %v480, %v484
    %v487 = vmul.f32 %v407, %v486
    %v488 = vmul.f32 %v410, %v486
    %v489 = vmul.f32 %v413, %v486
    %v490 = vmul.f32 %v416, %v486
    %v491 = vmul.f32 %v419, %v486
    %v492 = vmul.f32 %v422, %v486
    %v493 = vmul.f32 %v425, %v486
    %v494 = vmul.f32 %v428, %v486
    %v495 = vmul.f32 %v431, %v486
    %v496 = vmul.f32 %v434, %v486
    %v497 = vmul.f32 %v437, %v486
    %v498 = vmul.f32 %v440, %v486
    %v499 = vmul.f32 %v443, %v486
    %v500 = vmul.f32 %v446, %v486
    %v501 = vmul.f32 %v449, %v486
    %v502 = vmul.f32 %v452, %v486
    %v503 = vmul.f32 %v455, %v486
    %v504 = vmul.f32 %v458, %v486
    %v505 = vmul.f32 %v461, %v486
    %v506 = vmul.f32 %v464, %v486
    %v507 = vmul.f32 %v467, %v486
    %v508 = vmul.f32 %v470, %v486
    %v509 = vmul.f32 %v473, %v486
    %v510 = vmul.f32 %v476, %v486
    %v511 = vmul.f32 %v479, %v486
    %v512 = vmul.f32 %v269, %v269
    %v513 = vmul.f32 %v342, %v342
    %v514 = vmul.f32 %v271, %v271
    %v515 = vmul.f32 %v344, %v344
    %v516 = vmul.f32 %v274, %v274
    %v517 = vmul.f32 %v347, %v347
    %v518 = vmul.f32 %v276, %v276
    %v519 = vmul.f32 %v349, %v349
    %v520 = vmul.f32 %v279, %v279
    %v521 = vmul.f32 %v352, %v352
    %v522 = vmul.f32 %v281, %v281
    %v523 = vmul.f32 %v354, %v354
    %v524 = vmul.f32 %v284, %v284
    %v525 = vmul.f32 %v357, %v357
    %v526 = vmul.f32 %v286, %v286
    %v527 = vmul.f32 %v359, %v359
    %v528 = vmul.f32 %v289, %v289
    %v529 = vmul.f32 %v362, %v362
    %v530 = vmul.f32 %v291, %v291
    %v531 = vmul.f32 %v364, %v364
    %v532 = vmul.f32 %v294, %v294
    %v533 = vmul.f32 %v367, %v367
    %v534 = vmul.f32 %v296, %v296
    %v535 = vmul.f32 %v369, %v369
    %v536 = vmul.f32 %v299, %v299
    %v537 = vmul.f32 %v372, %v372
    %v538 = vmul.f32 %v301, %v301
    %v539 = vmul.f32 %v374, %v374
    %v540 = vmul.f32 %v304, %v304
    %v541 = vmul.f32 %v377, %v377
    %v542 = vmul.f32 %v306, %v306
    %v543 = vmul.f32 %v379, %v379
    %v544 = vmul.f32 %v309, %v309
    %v545 = vmul.f32 %v382, %v382
    %v546 = vmul.f32 %v311, %v311
    %v547 = vmul.f32 %v384, %v384
    %v548 = vmul.f32 %v314, %v314
    %v549 = vmul.f32 %v387, %v387
    %v550 = vmul.f32 %v316, %v316
    %v551 = vmul.f32 %v389, %v389
    %v552 = vmul.f32 %v319, %v319
    %v553 = vmul.f32 %v392, %v392
    %v554 = vmul.f32 %v321, %v321
    %v555 = vmul.f32 %v394, %v394
    %v556 = vmul.f32 %v324, %v324
    %v557 = vmul.f32 %v397, %v397
    %v558 = vmul.f32 %v326, %v326
    %v559 = vmul.f32 %v399, %v399
    %v560 = vmul.f32 %v329, %v329
    %v561 = vmul.f32 %v402, %v402
    %v562 = vadd.f32 %v512, %v513
    %563 = vadd.xlane.f32.xlu0 %v562
    %v564 = vpop.xlane.xlu0 %563
    %v565 = vadd.f32 %v514, %v515
    %566 = vadd.xlane.f32.xlu0 %v565
    %v567 = vpop.xlane.xlu0 %566
    %v568 = vadd.f32 %v516, %v517
    %569 = vadd.xlane.f32.xlu0 %v568
    %v570 = vpop.xlane.xlu0 %569
    %v571 = vadd.f32 %v518, %v519
    %572 = vadd.xlane.f32.xlu0 %v571
    %v573 = vpop.xlane.xlu0 %572
    %v574 = vadd.f32 %v520, %v521
    %575 = vadd.xlane.f32.xlu0 %v574
    %v576 = vpop.xlane.xlu0 %575
    %v577 = vadd.f32 %v522, %v523
    %578 = vadd.xlane.f32.xlu0 %v577
    %v579 = vpop.xlane.xlu0 %578
    %v580 = vadd.f32 %v524, %v525
    %581 = vadd.xlane.f32.xlu0 %v580
    %v582 = vpop.xlane.xlu0 %581
    %v583 = vadd.f32 %v526, %v527
    %584 = vadd.xlane.f32.xlu0 %v583
    %v585 = vpop.xlane.xlu0 %584
    %v586 = vadd.f32 %v528, %v529
    %587 = vadd.xlane.f32.xlu0 %v586
    %v588 = vpop.xlane.xlu0 %587
    %v589 = vadd.f32 %v530, %v531
    %590 = vadd.xlane.f32.xlu0 %v589
    %v591 = vpop.xlane.xlu0 %590
    %v592 = vadd.f32 %v532, %v533
    %593 = vadd.xlane.f32.xlu0 %v592
    %v594 = vpop.xlane.xlu0 %593
    %v595 = vadd.f32 %v534, %v535
    %596 = vadd.xlane.f32.xlu0 %v595
    %v597 = vpop.xlane.xlu0 %596
    %v598 = vadd.f32 %v536, %v537
    %599 = vadd.xlane.f32.xlu0 %v598
    %v600 = vpop.xlane.xlu0 %599
    %v601 = vadd.f32 %v538, %v539
    %602 = vadd.xlane.f32.xlu0 %v601
    %v603 = vpop.xlane.xlu0 %602
    %v604 = vadd.f32 %v540, %v541
    %605 = vadd.xlane.f32.xlu0 %v604
    %v606 = vpop.xlane.xlu0 %605
    %v607 = vadd.f32 %v542, %v543
    %608 = vadd.xlane.f32.xlu0 %v607
    %v609 = vpop.xlane.xlu0 %608
    %v610 = vadd.f32 %v544, %v545
    %611 = vadd.xlane.f32.xlu0 %v610
    %v612 = vpop.xlane.xlu0 %611
    %v613 = vadd.f32 %v546, %v547
    %614 = vadd.xlane.f32.xlu0 %v613
    %v615 = vpop.xlane.xlu0 %614
    %v616 = vadd.f32 %v548, %v549
    %617 = vadd.xlane.f32.xlu0 %v616
    %v618 = vpop.xlane.xlu0 %617
    %v619 = vadd.f32 %v550, %v551
    %620 = vadd.xlane.f32.xlu0 %v619
    %v621 = vpop.xlane.xlu0 %620
    %v622 = vadd.f32 %v552, %v553
    %623 = vadd.xlane.f32.xlu0 %v622
    %v624 = vpop.xlane.xlu0 %623
    %v625 = vadd.f32 %v554, %v555
    %626 = vadd.xlane.f32.xlu0 %v625
    %v627 = vpop.xlane.xlu0 %626
    %v628 = vadd.f32 %v556, %v557
    %629 = vadd.xlane.f32.xlu0 %v628
    %v630 = vpop.xlane.xlu0 %629
    %v631 = vadd.f32 %v558, %v559
    %632 = vadd.xlane.f32.xlu0 %v631
    %v633 = vpop.xlane.xlu0 %632
    %v634 = vadd.f32 %v560, %v561
    %635 = vadd.xlane.f32.xlu0 %v634
    %v636 = vpop.xlane.xlu0 %635
    %v637 = vmul.f32 %v564, %v486
    %v638 = vmul.f32 %v567, %v486
    %v639 = vmul.f32 %v570, %v486
    %v640 = vmul.f32 %v573, %v486
    %v641 = vmul.f32 %v576, %v486
    %v642 = vmul.f32 %v579, %v486
    %v643 = vmul.f32 %v582, %v486
    %v644 = vmul.f32 %v585, %v486
    %v645 = vmul.f32 %v588, %v486
    %v646 = vmul.f32 %v591, %v486
    %v647 = vmul.f32 %v594, %v486
    %v648 = vmul.f32 %v597, %v486
    %v649 = vmul.f32 %v600, %v486
    %v650 = vmul.f32 %v603, %v486
    %v651 = vmul.f32 %v606, %v486
    %v652 = vmul.f32 %v609, %v486
    %v653 = vmul.f32 %v612, %v486
    %v654 = vmul.f32 %v615, %v486
    %v655 = vmul.f32 %v618, %v486
    %v656 = vmul.f32 %v621, %v486
    %v657 = vmul.f32 %v624, %v486
    %v658 = vmul.f32 %v627, %v486
    %v659 = vmul.f32 %v630, %v486
    %v660 = vmul.f32 %v633, %v486
    %v661 = vmul.f32 %v636, %v486
    %v662 = vmul.f32 %v487, %v487
    %v663 = vmul.f32 %v488, %v488
    %v664 = vmul.f32 %v489, %v489
    %v665 = vmul.f32 %v490, %v490
    %v666 = vmul.f32 %v491, %v491
    %v667 = vmul.f32 %v492, %v492
    %v668 = vmul.f32 %v493, %v493
    %v669 = vmul.f32 %v494, %v494
    %v670 = vmul.f32 %v495, %v495
    %v671 = vmul.f32 %v496, %v496
    %v672 = vmul.f32 %v497, %v497
    %v673 = vmul.f32 %v498, %v498
    %v674 = vmul.f32 %v499, %v499
    %v675 = vmul.f32 %v500, %v500
    %v676 = vmul.f32 %v501, %v501
    %v677 = vmul.f32 %v502, %v502
    %v678 = vmul.f32 %v503, %v503
    %v679 = vmul.f32 %v504, %v504
    %v680 = vmul.f32 %v505, %v505
    %v681 = vmul.f32 %v506, %v506
    %v682 = vmul.f32 %v507, %v507
    %v683 = vmul.f32 %v508, %v508
    %v684 = vmul.f32 %v509, %v509
    %v685 = vmul.f32 %v510, %v510
    %v686 = vmul.f32 %v511, %v511
    %v687 = vsub.f32 %v637, %v662
    %v688 = vsub.f32 %v638, %v663
    %v689 = vsub.f32 %v639, %v664
    %v690 = vsub.f32 %v640, %v665
    %v691 = vsub.f32 %v641, %v666
    %v692 = vsub.f32 %v642, %v667
    %v693 = vsub.f32 %v643, %v668
    %v694 = vsub.f32 %v644, %v669
    %v695 = vsub.f32 %v645, %v670
    %v696 = vsub.f32 %v646, %v671
    %v697 = vsub.f32 %v647, %v672
    %v698 = vsub.f32 %v648, %v673
    %v699 = vsub.f32 %v649, %v674
    %v700 = vsub.f32 %v650, %v675
    %v701 = vsub.f32 %v651, %v676
    %v702 = vsub.f32 %v652, %v677
    %v703 = vsub.f32 %v653, %v678
    %v704 = vsub.f32 %v654, %v679
    %v705 = vsub.f32 %v655, %v680
    %v706 = vsub.f32 %v656, %v681
    %v707 = vsub.f32 %v657, %v682
    %v708 = vsub.f32 %v658, %v683
    %v709 = vsub.f32 %v659, %v684
    %v710 = vsub.f32 %v660, %v685
    %v711 = vsub.f32 %v661, %v686
    %v712 = vsub.f32 %v269, %v487
    %v713 = vsub.f32 %v342, %v487
    %v714 = vsub.f32 %v271, %v488
    %v715 = vsub.f32 %v344, %v488
    %v716 = vsub.f32 %v274, %v489
    %v717 = vsub.f32 %v347, %v489
    %v718 = vsub.f32 %v276, %v490
    %v719 = vsub.f32 %v349, %v490
    %v720 = vsub.f32 %v279, %v491
    %v721 = vsub.f32 %v352, %v491
    %v722 = vsub.f32 %v281, %v492
    %v723 = vsub.f32 %v354, %v492
    %v724 = vsub.f32 %v284, %v493
    %v725 = vsub.f32 %v357, %v493
    %v726 = vsub.f32 %v286, %v494
    %v727 = vsub.f32 %v359, %v494
    %v728 = vsub.f32 %v289, %v495
    %v729 = vsub.f32 %v362, %v495
    %v730 = vsub.f32 %v291, %v496
    %v731 = vsub.f32 %v364, %v496
    %v732 = vsub.f32 %v294, %v497
    %v733 = vsub.f32 %v367, %v497
    %v734 = vsub.f32 %v296, %v498
    %v735 = vsub.f32 %v369, %v498
    %v736 = vsub.f32 %v299, %v499
    %v737 = vsub.f32 %v372, %v499
    %v738 = vsub.f32 %v301, %v500
    %v739 = vsub.f32 %v374, %v500
    %v740 = vsub.f32 %v304, %v501
    %v741 = vsub.f32 %v377, %v501
    %v742 = vsub.f32 %v306, %v502
    %v743 = vsub.f32 %v379, %v502
    %v744 = vsub.f32 %v309, %v503
    %v745 = vsub.f32 %v382, %v503
    %v746 = vsub.f32 %v311, %v504
    %v747 = vsub.f32 %v384, %v504
    %v748 = vsub.f32 %v314, %v505
    %v749 = vsub.f32 %v387, %v505
    %v750 = vsub.f32 %v316, %v506
    %v751 = vsub.f32 %v389, %v506
    %v752 = vsub.f32 %v319, %v507
    %v753 = vsub.f32 %v392, %v507
    %v754 = vsub.f32 %v321, %v508
    %v755 = vsub.f32 %v394, %v508
    %v756 = vsub.f32 %v324, %v509
    %v757 = vsub.f32 %v397, %v509
    %v758 = vsub.f32 %v326, %v510
    %v759 = vsub.f32 %v399, %v510
    %v760 = vsub.f32 %v329, %v511
    %v761 = vsub.f32 %v402, %v511
    %v762 = vadd.f32 %v687, 1e-05
    %v763 = vadd.f32 %v688, 1e-05
    %v764 = vadd.f32 %v689, 1e-05
    %v765 = vadd.f32 %v690, 1e-05
    %v766 = vadd.f32 %v691, 1e-05
    %v767 = vadd.f32 %v692, 1e-05
    %v768 = vadd.f32 %v693, 1e-05
    %v769 = vadd.f32 %v694, 1e-05
    %v770 = vadd.f32 %v695, 1e-05
    %v771 = vadd.f32 %v696, 1e-05
    %v772 = vadd.f32 %v697, 1e-05
    %v773 = vadd.f32 %v698, 1e-05
    %v774 = vadd.f32 %v699, 1e-05
    %v775 = vadd.f32 %v700, 1e-05
    %v776 = vadd.f32 %v701, 1e-05
    %v777 = vadd.f32 %v702, 1e-05
    %v778 = vadd.f32 %v703, 1e-05
    %v779 = vadd.f32 %v704, 1e-05
    %v780 = vadd.f32 %v705, 1e-05
    %v781 = vadd.f32 %v706, 1e-05
    %v782 = vadd.f32 %v707, 1e-05
    %v783 = vadd.f32 %v708, 1e-05
    %v784 = vadd.f32 %v709, 1e-05
    %v785 = vadd.f32 %v710, 1e-05
    %v786 = vadd.f32 %v711, 1e-05
    %v787 = vrsqrt.pop %v762
    %v788 = vmul.f32 %v787, %v762
    %v789 = vmul.f32 %v788, %v787
    %v790 = vmul.f32 0.5, %v789
    %v791 = vsub.f32 1.5, %v790
    %v792 = vmul.f32 %v787, %v791
    %vm793 = vweird.f32 %v762
    %vm794 = vweird.f32 %v787
    %vm795 = vmor %vm793, %vm794
    %v796 = vsel %vm795, %v787, %v792
    %v797 = vrsqrt.pop %v763
    %v798 = vmul.f32 %v797, %v763
    %v799 = vmul.f32 %v798, %v797
    %v800 = vmul.f32 0.5, %v799
    %v801 = vsub.f32 1.5, %v800
    %v802 = vmul.f32 %v797, %v801
    %vm803 = vweird.f32 %v763
    %vm804 = vweird.f32 %v797
    %vm805 = vmor %vm803, %vm804
    %v806 = vsel %vm805, %v797, %v802
    %v807 = vrsqrt.pop %v764
    %v808 = vmul.f32 %v807, %v764
    %v809 = vmul.f32 %v808, %v807
    %v810 = vmul.f32 0.5, %v809
    %v811 = vsub.f32 1.5, %v810
    %v812 = vmul.f32 %v807, %v811
    %vm813 = vweird.f32 %v764
    %vm814 = vweird.f32 %v807
    %vm815 = vmor %vm813, %vm814
    %v816 = vsel %vm815, %v807, %v812
    %v817 = vrsqrt.pop %v765
    %v818 = vmul.f32 %v817, %v765
    %v819 = vmul.f32 %v818, %v817
    %v820 = vmul.f32 0.5, %v819
    %v821 = vsub.f32 1.5, %v820
    %v822 = vmul.f32 %v817, %v821
    %vm823 = vweird.f32 %v765
    %vm824 = vweird.f32 %v817
    %vm825 = vmor %vm823, %vm824
    %v826 = vsel %vm825, %v817, %v822
    %v827 = vrsqrt.pop %v766
    %v828 = vmul.f32 %v827, %v766
    %v829 = vmul.f32 %v828, %v827
    %v830 = vmul.f32 0.5, %v829
    %v831 = vsub.f32 1.5, %v830
    %v832 = vmul.f32 %v827, %v831
    %vm833 = vweird.f32 %v766
    %vm834 = vweird.f32 %v827
    %vm835 = vmor %vm833, %vm834
    %v836 = vsel %vm835, %v827, %v832
    %v837 = vrsqrt.pop %v767
    %v838 = vmul.f32 %v837, %v767
    %v839 = vmul.f32 %v838, %v837
    %v840 = vmul.f32 0.5, %v839
    %v841 = vsub.f32 1.5, %v840
    %v842 = vmul.f32 %v837, %v841
    %vm843 = vweird.f32 %v767
    %vm844 = vweird.f32 %v837
    %vm845 = vmor %vm843, %vm844
    %v846 = vsel %vm845, %v837, %v842
    %v847 = vrsqrt.pop %v768
    %v848 = vmul.f32 %v847, %v768
    %v849 = vmul.f32 %v848, %v847
    %v850 = vmul.f32 0.5, %v849
    %v851 = vsub.f32 1.5, %v850
    %v852 = vmul.f32 %v847, %v851
    %vm853 = vweird.f32 %v768
    %vm854 = vweird.f32 %v847
    %vm855 = vmor %vm853, %vm854
    %v856 = vsel %vm855, %v847, %v852
    %v857 = vrsqrt.pop %v769
    %v858 = vmul.f32 %v857, %v769
    %v859 = vmul.f32 %v858, %v857
    %v860 = vmul.f32 0.5, %v859
    %v861 = vsub.f32 1.5, %v860
    %v862 = vmul.f32 %v857, %v861
    %vm863 = vweird.f32 %v769
    %vm864 = vweird.f32 %v857
    %vm865 = vmor %vm863, %vm864
    %v866 = vsel %vm865, %v857, %v862
    %v867 = vrsqrt.pop %v770
    %v868 = vmul.f32 %v867, %v770
    %v869 = vmul.f32 %v868, %v867
    %v870 = vmul.f32 0.5, %v869
    %v871 = vsub.f32 1.5, %v870
    %v872 = vmul.f32 %v867, %v871
    %vm873 = vweird.f32 %v770
    %vm874 = vweird.f32 %v867
    %vm875 = vmor %vm873, %vm874
    %v876 = vsel %vm875, %v867, %v872
    %v877 = vrsqrt.pop %v771
    %v878 = vmul.f32 %v877, %v771
    %v879 = vmul.f32 %v878, %v877
    %v880 = vmul.f32 0.5, %v879
    %v881 = vsub.f32 1.5, %v880
    %v882 = vmul.f32 %v877, %v881
    %vm883 = vweird.f32 %v771
    %vm884 = vweird.f32 %v877
    %vm885 = vmor %vm883, %vm884
    %v886 = vsel %vm885, %v877, %v882
    %v887 = vrsqrt.pop %v772
    %v888 = vmul.f32 %v887, %v772
    %v889 = vmul.f32 %v888, %v887
    %v890 = vmul.f32 0.5, %v889
    %v891 = vsub.f32 1.5, %v890
    %v892 = vmul.f32 %v887, %v891
    %vm893 = vweird.f32 %v772
    %vm894 = vweird.f32 %v887
    %vm895 = vmor %vm893, %vm894
    %v896 = vsel %vm895, %v887, %v892
    %v897 = vrsqrt.pop %v773
    %v898 = vmul.f32 %v897, %v773
    %v899 = vmul.f32 %v898, %v897
    %v900 = vmul.f32 0.5, %v899
    %v901 = vsub.f32 1.5, %v900
    %v902 = vmul.f32 %v897, %v901
    %vm903 = vweird.f32 %v773
    %vm904 = vweird.f32 %v897
    %vm905 = vmor %vm903, %vm904
    %v906 = vsel %vm905, %v897, %v902
    %v907 = vrsqrt.pop %v774
    %v908 = vmul.f32 %v907, %v774
    %v909 = vmul.f32 %v908, %v907
    %v910 = vmul.f32 0.5, %v909
    %v911 = vsub.f32 1.5, %v910
    %v912 = vmul.f32 %v907, %v911
    %vm913 = vweird.f32 %v774
    %vm914 = vweird.f32 %v907
    %vm915 = vmor %vm913, %vm914
    %v916 = vsel %vm915, %v907, %v912
    %v917 = vrsqrt.pop %v775
    %v918 = vmul.f32 %v917, %v775
    %v919 = vmul.f32 %v918, %v917
    %v920 = vmul.f32 0.5, %v919
    %v921 = vsub.f32 1.5, %v920
    %v922 = vmul.f32 %v917, %v921
    %vm923 = vweird.f32 %v775
    %vm924 = vweird.f32 %v917
    %vm925 = vmor %vm923, %vm924
    %v926 = vsel %vm925, %v917, %v922
    %v927 = vrsqrt.pop %v776
    %v928 = vmul.f32 %v927, %v776
    %v929 = vmul.f32 %v928, %v927
    %v930 = vmul.f32 0.5, %v929
    %v931 = vsub.f32 1.5, %v930
    %v932 = vmul.f32 %v927, %v931
    %vm933 = vweird.f32 %v776
    %vm934 = vweird.f32 %v927
    %vm935 = vmor %vm933, %vm934
    %v936 = vsel %vm935, %v927, %v932
    %v937 = vrsqrt.pop %v777
    %v938 = vmul.f32 %v937, %v777
    %v939 = vmul.f32 %v938, %v937
    %v940 = vmul.f32 0.5, %v939
    %v941 = vsub.f32 1.5, %v940
    %v942 = vmul.f32 %v937, %v941
    %vm943 = vweird.f32 %v777
    %vm944 = vweird.f32 %v937
    %vm945 = vmor %vm943, %vm944
    %v946 = vsel %vm945, %v937, %v942
    %v947 = vrsqrt.pop %v778
    %v948 = vmul.f32 %v947, %v778
    %v949 = vmul.f32 %v948, %v947
    %v950 = vmul.f32 0.5, %v949
    %v951 = vsub.f32 1.5, %v950
    %v952 = vmul.f32 %v947, %v951
    %vm953 = vweird.f32 %v778
    %vm954 = vweird.f32 %v947
    %vm955 = vmor %vm953, %vm954
    %v956 = vsel %vm955, %v947, %v952
    %v957 = vrsqrt.pop %v779
    %v958 = vmul.f32 %v957, %v779
    %v959 = vmul.f32 %v958, %v957
    %v960 = vmul.f32 0.5, %v959
    %v961 = vsub.f32 1.5, %v960
    %v962 = vmul.f32 %v957, %v961
    %vm963 = vweird.f32 %v779
    %vm964 = vweird.f32 %v957
    %vm965 = vmor %vm963, %vm964
    %v966 = vsel %vm965, %v957, %v962
    %v967 = vrsqrt.pop %v780
    %v968 = vmul.f32 %v967, %v780
    %v969 = vmul.f32 %v968, %v967
    %v970 = vmul.f32 0.5, %v969
    %v971 = vsub.f32 1.5, %v970
    %v972 = vmul.f32 %v967, %v971
    %vm973 = vweird.f32 %v780
    %vm974 = vweird.f32 %v967
    %vm975 = vmor %vm973, %vm974
    %v976 = vsel %vm975, %v967, %v972
    %v977 = vrsqrt.pop %v781
    %v978 = vmul.f32 %v977, %v781
    %v979 = vmul.f32 %v978, %v977
    %v980 = vmul.f32 0.5, %v979
    %v981 = vsub.f32 1.5, %v980
    %v982 = vmul.f32 %v977, %v981
    %vm983 = vweird.f32 %v781
    %vm984 = vweird.f32 %v977
    %vm985 = vmor %vm983, %vm984
    %v986 = vsel %vm985, %v977, %v982
    %v987 = vrsqrt.pop %v782
    %v988 = vmul.f32 %v987, %v782
    %v989 = vmul.f32 %v988, %v987
    %v990 = vmul.f32 0.5, %v989
    %v991 = vsub.f32 1.5, %v990
    %v992 = vmul.f32 %v987, %v991
    %vm993 = vweird.f32 %v782
    %vm994 = vweird.f32 %v987
    %vm995 = vmor %vm993, %vm994
    %v996 = vsel %vm995, %v987, %v992
    %v997 = vrsqrt.pop %v783
    %v998 = vmul.f32 %v997, %v783
    %v999 = vmul.f32 %v998, %v997
    %v1000 = vmul.f32 0.5, %v999
    %v1001 = vsub.f32 1.5, %v1000
    %v1002 = vmul.f32 %v997, %v1001
    %vm1003 = vweird.f32 %v783
    %vm1004 = vweird.f32 %v997
    %vm1005 = vmor %vm1003, %vm1004
    %v1006 = vsel %vm1005, %v997, %v1002
    %v1007 = vrsqrt.pop %v784
    %v1008 = vmul.f32 %v1007, %v784
    %v1009 = vmul.f32 %v1008, %v1007
    %v1010 = vmul.f32 0.5, %v1009
    %v1011 = vsub.f32 1.5, %v1010
    %v1012 = vmul.f32 %v1007, %v1011
    %vm1013 = vweird.f32 %v784
    %vm1014 = vweird.f32 %v1007
    %vm1015 = vmor %vm1013, %vm1014
    %v1016 = vsel %vm1015, %v1007, %v1012
    %v1017 = vrsqrt.pop %v785
    %v1018 = vmul.f32 %v1017, %v785
    %v1019 = vmul.f32 %v1018, %v1017
    %v1020 = vmul.f32 0.5, %v1019
    %v1021 = vsub.f32 1.5, %v1020
    %v1022 = vmul.f32 %v1017, %v1021
    %vm1023 = vweird.f32 %v785
    %vm1024 = vweird.f32 %v1017
    %vm1025 = vmor %vm1023, %vm1024
    %v1026 = vsel %vm1025, %v1017, %v1022
    %v1027 = vrsqrt.pop %v786
    %v1028 = vmul.f32 %v1027, %v786
    %v1029 = vmul.f32 %v1028, %v1027
    %v1030 = vmul.f32 0.5, %v1029
    %v1031 = vsub.f32 1.5, %v1030
    %v1032 = vmul.f32 %v1027, %v1031
    %vm1033 = vweird.f32 %v786
    %vm1034 = vweird.f32 %v1027
    %vm1035 = vmor %vm1033, %vm1034
    %v1036 = vsel %vm1035, %v1027, %v1032
    %v1037 = vmul.f32 %v712, %v796
    %v1038 = vmul.f32 %v713, %v796
    %v1039 = vmul.f32 %v714, %v806
    %v1040 = vmul.f32 %v715, %v806
    %v1041 = vmul.f32 %v716, %v816
    %v1042 = vmul.f32 %v717, %v816
    %v1043 = vmul.f32 %v718, %v826
    %v1044 = vmul.f32 %v719, %v826
    %v1045 = vmul.f32 %v720, %v836
    %v1046 = vmul.f32 %v721, %v836
    %v1047 = vmul.f32 %v722, %v846
    %v1048 = vmul.f32 %v723, %v846
    %v1049 = vmul.f32 %v724, %v856
    %v1050 = vmul.f32 %v725, %v856
    %v1051 = vmul.f32 %v726, %v866
    %v1052 = vmul.f32 %v727, %v866
    %v1053 = vmul.f32 %v728, %v876
    %v1054 = vmul.f32 %v729, %v876
    %v1055 = vmul.f32 %v730, %v886
    %v1056 = vmul.f32 %v731, %v886
    %v1057 = vmul.f32 %v732, %v896
    %v1058 = vmul.f32 %v733, %v896
    %v1059 = vmul.f32 %v734, %v906
    %v1060 = vmul.f32 %v735, %v906
    %v1061 = vmul.f32 %v736, %v916
    %v1062 = vmul.f32 %v737, %v916
    %v1063 = vmul.f32 %v738, %v926
    %v1064 = vmul.f32 %v739, %v926
    %v1065 = vmul.f32 %v740, %v936
    %v1066 = vmul.f32 %v741, %v936
    %v1067 = vmul.f32 %v742, %v946
    %v1068 = vmul.f32 %v743, %v946
    %v1069 = vmul.f32 %v744, %v956
    %v1070 = vmul.f32 %v745, %v956
    %v1071 = vmul.f32 %v746, %v966
    %v1072 = vmul.f32 %v747, %v966
    %v1073 = vmul.f32 %v748, %v976
    %v1074 = vmul.f32 %v749, %v976
    %v1075 = vmul.f32 %v750, %v986
    %v1076 = vmul.f32 %v751, %v986
    %v1077 = vmul.f32 %v752, %v996
    %v1078 = vmul.f32 %v753, %v996
    %v1079 = vmul.f32 %v754, %v1006
    %v1080 = vmul.f32 %v755, %v1006
    %v1081 = vmul.f32 %v756, %v1016
    %v1082 = vmul.f32 %v757, %v1016
    %v1083 = vmul.f32 %v758, %v1026
    %v1084 = vmul.f32 %v759, %v1026
    %v1085 = vmul.f32 %v760, %v1036
    %v1086 = vmul.f32 %v761, %v1036
    %v1087 = vperm.slane %v171, 1
    %v1088 = vperm.slane %v171, 5
    %v1091 = vperm.slane %v1087, 1
    %v1092 = vperm.slane %v1088, 1
    %v1093 = vmul.f32 %v1037, %v1091
    %v1094 = vmul.f32 %v1038, %v1092
    %v1095 = vmul.f32 %v1039, %v1091
    %v1096 = vmul.f32 %v1040, %v1092
    %v1097 = vmul.f32 %v1041, %v1091
    %v1098 = vmul.f32 %v1042, %v1092
    %v1099 = vmul.f32 %v1043, %v1091
    %v1100 = vmul.f32 %v1044, %v1092
    %v1101 = vmul.f32 %v1045, %v1091
    %v1102 = vmul.f32 %v1046, %v1092
    %v1103 = vmul.f32 %v1047, %v1091
    %v1104 = vmul.f32 %v1048, %v1092
    %v1105 = vmul.f32 %v1049, %v1091
    %v1106 = vmul.f32 %v1050, %v1092
    %v1107 = vmul.f32 %v1051, %v1091
    %v1108 = vmul.f32 %v1052, %v1092
    %v1109 = vmul.f32 %v1053, %v1091
    %v1110 = vmul.f32 %v1054, %v1092
    %v1111 = vmul.f32 %v1055, %v1091
    %v1112 = vmul.f32 %v1056, %v1092
    %v1113 = vmul.f32 %v1057, %v1091
    %v1114 = vmul.f32 %v1058, %v1092
    %v1115 = vmul.f32 %v1059, %v1091
    %v1116 = vmul.f32 %v1060, %v1092
    %v1117 = vmul.f32 %v1061, %v1091
    %v1118 = vmul.f32 %v1062, %v1092
    %v1119 = vmul.f32 %v1063, %v1091
    %v1120 = vmul.f32 %v1064, %v1092
    %v1121 = vmul.f32 %v1065, %v1091
    %v1122 = vmul.f32 %v1066, %v1092
    %v1123 = vmul.f32 %v1067, %v1091
    %v1124 = vmul.f32 %v1068, %v1092
    %v1125 = vmul.f32 %v1069, %v1091
    %v1126 = vmul.f32 %v1070, %v1092
    %v1127 = vmul.f32 %v1071, %v1091
    %v1128 = vmul.f32 %v1072, %v1092
    %v1129 = vmul.f32 %v1073, %v1091
    %v1130 = vmul.f32 %v1074, %v1092
    %v1131 = vmul.f32 %v1075, %v1091
    %v1132 = vmul.f32 %v1076, %v1092
    %v1133 = vmul.f32 %v1077, %v1091
    %v1134 = vmul.f32 %v1078, %v1092
    %v1135 = vmul.f32 %v1079, %v1091
    %v1136 = vmul.f32 %v1080, %v1092
    %v1137 = vmul.f32 %v1081, %v1091
    %v1138 = vmul.f32 %v1082, %v1092
    %v1139 = vmul.f32 %v1083, %v1091
    %v1140 = vmul.f32 %v1084, %v1092
    %v1141 = vmul.f32 %v1085, %v1091
    %v1142 = vmul.f32 %v1086, %v1092
    %v1143 = vperm.slane %v171, 2
    %v1144 = vperm.slane %v171, 6
    %v1147 = vperm.slane %v1143, 2
    %v1148 = vperm.slane %v1144, 2
    %v1149 = vadd.f32 %v1093, %v1147
    %v1150 = vadd.f32 %v1094, %v1148
    %v1151 = vadd.f32 %v1095, %v1147
    %v1152 = vadd.f32 %v1096, %v1148
    %v1153 = vadd.f32 %v1097, %v1147
    %v1154 = vadd.f32 %v1098, %v1148
    %v1155 = vadd.f32 %v1099, %v1147
    %v1156 = vadd.f32 %v1100, %v1148
    %v1157 = vadd.f32 %v1101, %v1147
    %v1158 = vadd.f32 %v1102, %v1148
    %v1159 = vadd.f32 %v1103, %v1147
    %v1160 = vadd.f32 %v1104, %v1148
    %v1161 = vadd.f32 %v1105, %v1147
    %v1162 = vadd.f32 %v1106, %v1148
    %v1163 = vadd.f32 %v1107, %v1147
    %v1164 = vadd.f32 %v1108, %v1148
    %v1165 = vadd.f32 %v1109, %v1147
    %v1166 = vadd.f32 %v1110, %v1148
    %v1167 = vadd.f32 %v1111, %v1147
    %v1168 = vadd.f32 %v1112, %v1148
    %v1169 = vadd.f32 %v1113, %v1147
    %v1170 = vadd.f32 %v1114, %v1148
    %v1171 = vadd.f32 %v1115, %v1147
    %v1172 = vadd.f32 %v1116, %v1148
    %v1173 = vadd.f32 %v1117, %v1147
    %v1174 = vadd.f32 %v1118, %v1148
    %v1175 = vadd.f32 %v1119, %v1147
    %v1176 = vadd.f32 %v1120, %v1148
    %v1177 = vadd.f32 %v1121, %v1147
    %v1178 = vadd.f32 %v1122, %v1148
    %v1179 = vadd.f32 %v1123, %v1147
    %v1180 = vadd.f32 %v1124, %v1148
    %v1181 = vadd.f32 %v1125, %v1147
    %v1182 = vadd.f32 %v1126, %v1148
    %v1183 = vadd.f32 %v1127, %v1147
    %v1184 = vadd.f32 %v1128, %v1148
    %v1185 = vadd.f32 %v1129, %v1147
    %v1186 = vadd.f32 %v1130, %v1148
    %v1187 = vadd.f32 %v1131, %v1147
    %v1188 = vadd.f32 %v1132, %v1148
    %v1189 = vadd.f32 %v1133, %v1147
    %v1190 = vadd.f32 %v1134, %v1148
    %v1191 = vadd.f32 %v1135, %v1147
    %v1192 = vadd.f32 %v1136, %v1148
    %v1193 = vadd.f32 %v1137, %v1147
    %v1194 = vadd.f32 %v1138, %v1148
    %v1195 = vadd.f32 %v1139, %v1147
    %v1196 = vadd.f32 %v1140, %v1148
    %v1197 = vadd.f32 %v1141, %v1147
    %v1198 = vadd.f32 %v1142, %v1148
    %v1199 = vmax.f32 %v1149, 0.0
    %v1200 = vmax.f32 %v1150, 0.0
    %v1201 = vmax.f32 %v1151, 0.0
    %v1202 = vmax.f32 %v1152, 0.0
    %v1203 = vmax.f32 %v1153, 0.0
    %v1204 = vmax.f32 %v1154, 0.0
    %v1205 = vmax.f32 %v1155, 0.0
    %v1206 = vmax.f32 %v1156, 0.0
    %v1207 = vmax.f32 %v1157, 0.0
    %v1208 = vmax.f32 %v1158, 0.0
    %v1209 = vmax.f32 %v1159, 0.0
    %v1210 = vmax.f32 %v1160, 0.0
    %v1211 = vmax.f32 %v1161, 0.0
    %v1212 = vmax.f32 %v1162, 0.0
    %v1213 = vmax.f32 %v1163, 0.0
    %v1214 = vmax.f32 %v1164, 0.0
    %v1215 = vmax.f32 %v1165, 0.0
    %v1216 = vmax.f32 %v1166, 0.0
    %v1217 = vmax.f32 %v1167, 0.0
    %v1218 = vmax.f32 %v1168, 0.0
    %v1219 = vmax.f32 %v1169, 0.0
    %v1220 = vmax.f32 %v1170, 0.0
    %v1221 = vmax.f32 %v1171, 0.0
    %v1222 = vmax.f32 %v1172, 0.0
    %v1223 = vmax.f32 %v1173, 0.0
    %v1224 = vmax.f32 %v1174, 0.0
    %v1225 = vmax.f32 %v1175, 0.0
    %v1226 = vmax.f32 %v1176, 0.0
    %v1227 = vmax.f32 %v1177, 0.0
    %v1228 = vmax.f32 %v1178, 0.0
    %v1229 = vmax.f32 %v1179, 0.0
    %v1230 = vmax.f32 %v1180, 0.0
    %v1231 = vmax.f32 %v1181, 0.0
    %v1232 = vmax.f32 %v1182, 0.0
    %v1233 = vmax.f32 %v1183, 0.0
    %v1234 = vmax.f32 %v1184, 0.0
    %v1235 = vmax.f32 %v1185, 0.0
    %v1236 = vmax.f32 %v1186, 0.0
    %v1237 = vmax.f32 %v1187, 0.0
    %v1238 = vmax.f32 %v1188, 0.0
    %v1239 = vmax.f32 %v1189, 0.0
    %v1240 = vmax.f32 %v1190, 0.0
    %v1241 = vmax.f32 %v1191, 0.0
    %v1242 = vmax.f32 %v1192, 0.0
    %v1243 = vmax.f32 %v1193, 0.0
    %v1244 = vmax.f32 %v1194, 0.0
    %v1245 = vmax.f32 %v1195, 0.0
    %v1246 = vmax.f32 %v1196, 0.0
    %v1247 = vmax.f32 %v1197, 0.0
    %v1248 = vmax.f32 %v1198, 0.0
    %v1249 = vpack.c.bf16 %v1201, %v1199
    %v1250 = vpack.c.bf16 %v1202, %v1200
    %v1251 = vpack.c.bf16 %v1205, %v1203
    %v1252 = vpack.c.bf16 %v1206, %v1204
    %v1253 = vpack.c.bf16 %v1209, %v1207
    %v1254 = vpack.c.bf16 %v1210, %v1208
    %v1255 = vpack.c.bf16 %v1213, %v1211
    %v1256 = vpack.c.bf16 %v1214, %v1212
    %v1257 = vpack.c.bf16 %v1217, %v1215
    %v1258 = vpack.c.bf16 %v1218, %v1216
    %v1259 = vpack.c.bf16 %v1221, %v1219
    %v1260 = vpack.c.bf16 %v1222, %v1220
    %v1261 = vpack.c.bf16 %v1225, %v1223
    %v1262 = vpack.c.bf16 %v1226, %v1224
    %v1263 = vpack.c.bf16 %v1229, %v1227
    %v1264 = vpack.c.bf16 %v1230, %v1228
    %v1265 = vpack.c.bf16 %v1233, %v1231
    %v1266 = vpack.c.bf16 %v1234, %v1232
    %v1267 = vpack.c.bf16 %v1237, %v1235
    %v1268 = vpack.c.bf16 %v1238, %v1236
    %v1269 = vpack.c.bf16 %v1241, %v1239
    %v1270 = vpack.c.bf16 %v1242, %v1240
    %v1271 = vpack.c.bf16 %v1245, %v1243
    %v1272 = vpack.c.bf16 %v1246, %v1244
    %v1273 = vpack.c.bf16 %v1247, %v1247
    %v1274 = vpack.c.bf16 %v1248, %v1248
    %v1275 = vld [vmem:[#allocation8] sm:$0xff]
    %v1276 = vld [vmem:[#allocation8 + $0x8] sm:$0xff]
    %v1277 = vld [vmem:[#allocation8 + $0x10] sm:$0xff]
    %v1278 = vld [vmem:[#allocation8 + $0x18] sm:$0xff]
    %v1279 = vld [vmem:[#allocation8 + $0x20] sm:$0xff]
    %v1280 = vld [vmem:[#allocation8 + $0x28] sm:$0xff]
    %v1281 = vld [vmem:[#allocation8 + $0x30] sm:$0xff]
    %v1282 = vld [vmem:[#allocation8 + $0x38] sm:$0xff]
    %v1283 = vld [vmem:[#allocation8 + $0x40] sm:$0xff]
    %v1284 = vld [vmem:[#allocation8 + $0x48] sm:$0xff]
    %v1285 = vld [vmem:[#allocation8 + $0x50] sm:$0xff]
    %v1286 = vld [vmem:[#allocation8 + $0x58] sm:$0xff]
    %v1287 = vld [vmem:[#allocation8 + $0x60] sm:$0xff]
    %v1288 = vld [vmem:[#allocation8 + $0x68] sm:$0xff]
    %v1289 = vld [vmem:[#allocation8 + $0x70] sm:$0xff]
    %v1290 = vld [vmem:[#allocation8 + $0x78] sm:$0xff]
    %v1291 = vld [vmem:[#allocation8 + $0x80] sm:$0xff]
    %v1292 = vld [vmem:[#allocation8 + $0x88] sm:$0xff]
    %v1293 = vld [vmem:[#allocation8 + $0x90] sm:$0xff]
    %v1294 = vld [vmem:[#allocation8 + $0x98] sm:$0xff]
    %v1295 = vld [vmem:[#allocation8 + $0xa0] sm:$0xff]
    %v1296 = vld [vmem:[#allocation8 + $0xa8] sm:$0xff]
    %v1297 = vld [vmem:[#allocation8 + $0xb0] sm:$0xff]
    %v1298 = vld [vmem:[#allocation8 + $0xb8] sm:$0xff]
    %v1299 = vld [vmem:[#allocation8 + $0xc0] sm:$0xff]
    %v1300 = vld [vmem:[#allocation8 + $0xc8] sm:$0xff]
    %v1301 = vld [vmem:[#allocation8 + $0xd0] sm:$0xff]
    %v1302 = vld [vmem:[#allocation8 + $0xd8] sm:$0xff]
    %v1303 = vld [vmem:[#allocation8 + $0xe0] sm:$0xff]
    %v1304 = vld [vmem:[#allocation8 + $0xe8] sm:$0xff]
    %v1305 = vld [vmem:[#allocation8 + $0xf0] sm:$0xff]
    %v1306 = vld [vmem:[#allocation8 + $0xf8] sm:$0xff]
    %v1307 = vld [vmem:[#allocation10] sm:$0x77]
    %v1309 = vperm.slane %v1307, 0
    %v1310 = vperm.slane %v1307, 4
    %v1313 = vperm.slane %v1309, 0
    %v1314 = vperm.slane %v1310, 0
    %v1347 = vunpack.c.l.b16 %v1275
    %v1348 = vunpack.c.h.b16 %v1275
    %v1349 = vunpack.c.l.b16 %v1276
    %v1350 = vunpack.c.h.b16 %v1276
    %v1351 = vunpack.c.l.b16 %v1277
    %v1352 = vunpack.c.h.b16 %v1277
    %v1353 = vunpack.c.l.b16 %v1278
    %v1354 = vunpack.c.h.b16 %v1278
    %v1355 = vunpack.c.l.b16 %v1279
    %v1356 = vunpack.c.h.b16 %v1279
    %v1357 = vunpack.c.l.b16 %v1280
    %v1358 = vunpack.c.h.b16 %v1280
    %v1359 = vunpack.c.l.b16 %v1281
    %v1360 = vunpack.c.h.b16 %v1281
    %v1361 = vunpack.c.l.b16 %v1282
    %v1362 = vunpack.c.h.b16 %v1282
    %v1363 = vunpack.c.l.b16 %v1283
    %v1364 = vunpack.c.h.b16 %v1283
    %v1365 = vunpack.c.l.b16 %v1284
    %v1366 = vunpack.c.h.b16 %v1284
    %v1367 = vunpack.c.l.b16 %v1285
    %v1368 = vunpack.c.h.b16 %v1285
    %v1369 = vunpack.c.l.b16 %v1286
    %v1370 = vunpack.c.h.b16 %v1286
    %v1371 = vunpack.c.l.b16 %v1287
    %v1372 = vunpack.c.h.b16 %v1287
    %v1373 = vunpack.c.l.b16 %v1288
    %v1374 = vunpack.c.h.b16 %v1288
    %v1375 = vunpack.c.l.b16 %v1289
    %v1376 = vunpack.c.h.b16 %v1289
    %v1377 = vunpack.c.l.b16 %v1290
    %v1378 = vunpack.c.h.b16 %v1290
    %v1379 = vunpack.c.l.b16 %v1291
    %v1380 = vunpack.c.h.b16 %v1291
    %v1381 = vunpack.c.l.b16 %v1292
    %v1382 = vunpack.c.h.b16 %v1292
    %v1383 = vunpack.c.l.b16 %v1293
    %v1384 = vunpack.c.h.b16 %v1293
    %v1385 = vunpack.c.l.b16 %v1294
    %v1386 = vunpack.c.h.b16 %v1294
    %v1387 = vunpack.c.l.b16 %v1295
    %v1388 = vunpack.c.h.b16 %v1295
    %v1389 = vunpack.c.l.b16 %v1296
    %v1390 = vunpack.c.h.b16 %v1296
    %v1391 = vunpack.c.l.b16 %v1297
    %v1392 = vunpack.c.h.b16 %v1297
    %v1393 = vunpack.c.l.b16 %v1298
    %v1394 = vunpack.c.h.b16 %v1298
    %v1395 = vunpack.c.l.b16 %v1299
    %v1396 = vunpack.c.h.b16 %v1299
    %v1397 = vunpack.c.l.b16 %v1300
    %v1398 = vunpack.c.h.b16 %v1300
    %v1399 = vunpack.c.l.b16 %v1301
    %v1400 = vunpack.c.h.b16 %v1301
    %v1401 = vunpack.c.l.b16 %v1302
    %v1402 = vunpack.c.h.b16 %v1302
    %v1403 = vunpack.c.l.b16 %v1303
    %v1404 = vunpack.c.h.b16 %v1303
    %v1405 = vunpack.c.l.b16 %v1304
    %v1406 = vunpack.c.h.b16 %v1304
    %v1407 = vunpack.c.l.b16 %v1305
    %v1408 = vunpack.c.h.b16 %v1305
    %v1409 = vunpack.c.l.b16 %v1306
    %v1410 = vunpack.c.h.b16 %v1306
    %v1411 = vpack.c.b16 %v1349, %v1347
    %v1412 = vpack.c.b16 %v1350, %v1348
    %v1413 = vpack.c.b16 %v1353, %v1351
    %v1414 = vpack.c.b16 %v1354, %v1352
    %v1415 = vpack.c.b16 %v1357, %v1355
    %v1416 = vpack.c.b16 %v1358, %v1356
    %v1417 = vpack.c.b16 %v1361, %v1359
    %v1418 = vpack.c.b16 %v1362, %v1360
    %v1419 = vpack.c.b16 %v1365, %v1363
    %v1420 = vpack.c.b16 %v1366, %v1364
    %v1421 = vpack.c.b16 %v1369, %v1367
    %v1422 = vpack.c.b16 %v1370, %v1368
    %v1423 = vpack.c.b16 %v1373, %v1371
    %v1424 = vpack.c.b16 %v1374, %v1372
    %v1425 = vpack.c.b16 %v1377, %v1375
    %v1426 = vpack.c.b16 %v1378, %v1376
    %v1427 = vpack.c.b16 %v1381, %v1379
    %v1428 = vpack.c.b16 %v1382, %v1380
    %v1429 = vpack.c.b16 %v1385, %v1383
    %v1430 = vpack.c.b16 %v1386, %v1384
    %v1431 = vpack.c.b16 %v1389, %v1387
    %v1432 = vpack.c.b16 %v1390, %v1388
    %v1433 = vpack.c.b16 %v1393, %v1391
    %v1434 = vpack.c.b16 %v1394, %v1392
    %v1435 = vpack.c.b16 %v1397, %v1395
    %v1436 = vpack.c.b16 %v1398, %v1396
    %v1437 = vpack.c.b16 %v1401, %v1399
    %v1438 = vpack.c.b16 %v1402, %v1400
    %v1439 = vpack.c.b16 %v1405, %v1403
    %v1440 = vpack.c.b16 %v1406, %v1404
    %v1441 = vpack.c.b16 %v1409, %v1407
    %v1442 = vpack.c.b16 %v1410, %v1408
    %1475 = vmatpush.bf16.msra.mxu0 %v1425
    %1476 = vmatpush.bf16.msra.mxu0 %v1423
    %1477 = vmatpush.bf16.msra.mxu0 %v1421
    %1478 = vmatpush.bf16.msra.mxu0 %v1419
    %1479 = vmatpush.bf16.msra.mxu0 %v1417
    %1480 = vmatpush.bf16.msra.mxu0 %v1415
    %1481 = vmatpush.bf16.msra.mxu0 %v1413
    %1482 = vmatpush.bf16.msra.mxu0 %v1411
    %1483 = vmatmul.bf16.gmra.mxu0 %v1249
    %v1484 = vpop.f32.mrf.mxu0
    %v1485 = vadd.f32 %v1313, %v1484
    %v1486 = vpop.f32.mrf.mxu0
    %v1487 = vadd.f32 %v1313, %v1486
    %1488 = vmatmul.bf16.gmra.mxu0 %v1251
    %v1489 = vpop.f32.mrf.mxu0
    %v1490 = vadd.f32 %v1313, %v1489
    %v1491 = vpop.f32.mrf.mxu0
    %v1492 = vadd.f32 %v1313, %v1491
    %1493 = vmatmul.bf16.gmra.mxu0 %v1253
    %v1494 = vpop.f32.mrf.mxu0
    %v1495 = vadd.f32 %v1313, %v1494
    %v1496 = vpop.f32.mrf.mxu0
    %v1497 = vadd.f32 %v1313, %v1496
    %1498 = vmatmul.bf16.gmra.mxu0 %v1255
    %v1499 = vpop.f32.mrf.mxu0
    %v1500 = vadd.f32 %v1313, %v1499
    %v1501 = vpop.f32.mrf.mxu0
    %v1502 = vadd.f32 %v1313, %v1501
    %1503 = vmatmul.bf16.gmra.mxu0 %v1257
    %v1504 = vpop.f32.mrf.mxu0
    %v1505 = vadd.f32 %v1313, %v1504
    %v1506 = vpop.f32.mrf.mxu0
    %v1507 = vadd.f32 %v1313, %v1506
    %1508 = vmatmul.bf16.gmra.mxu0 %v1259
    %v1509 = vpop.f32.mrf.mxu0
    %v1510 = vadd.f32 %v1313, %v1509
    %v1511 = vpop.f32.mrf.mxu0
    %v1512 = vadd.f32 %v1313, %v1511
    %1513 = vmatmul.bf16.gmra.mxu0 %v1261
    %v1514 = vpop.f32.mrf.mxu0
    %v1515 = vadd.f32 %v1313, %v1514
    %v1516 = vpop.f32.mrf.mxu0
    %v1517 = vadd.f32 %v1313, %v1516
    %1518 = vmatmul.bf16.gmra.mxu0 %v1263
    %v1519 = vpop.f32.mrf.mxu0
    %v1520 = vadd.f32 %v1313, %v1519
    %v1521 = vpop.f32.mrf.mxu0
    %v1522 = vadd.f32 %v1313, %v1521
    %1523 = vmatmul.bf16.gmra.mxu0 %v1265
    %v1524 = vpop.f32.mrf.mxu0
    %v1525 = vadd.f32 %v1313, %v1524
    %v1526 = vpop.f32.mrf.mxu0
    %v1527 = vadd.f32 %v1313, %v1526
    %1528 = vmatmul.bf16.gmra.mxu0 %v1267
    %v1529 = vpop.f32.mrf.mxu0
    %v1530 = vadd.f32 %v1313, %v1529
    %v1531 = vpop.f32.mrf.mxu0
    %v1532 = vadd.f32 %v1313, %v1531
    %1533 = vmatmul.bf16.gmra.mxu0 %v1269
    %v1534 = vpop.f32.mrf.mxu0
    %v1535 = vadd.f32 %v1313, %v1534
    %v1536 = vpop.f32.mrf.mxu0
    %v1537 = vadd.f32 %v1313, %v1536
    %1538 = vmatmul.bf16.gmra.mxu0 %v1271
    %v1539 = vpop.f32.mrf.mxu0
    %v1540 = vadd.f32 %v1313, %v1539
    %v1541 = vpop.f32.mrf.mxu0
    %v1542 = vadd.f32 %v1313, %v1541
    %1543 = vmatmul.bf16.gmra.mxu0 %v1273
    %v1544 = vpop.f32.mrf.mxu0
    %v1545 = vadd.f32 %v1313, %v1544
    %v1546 = vpop.f32.mrf.mxu0
    %1547 = vdwg.mxu0
    %1548 = vmatpush.bf16.msra.mxu0 %v1441
    %1549 = vmatpush.bf16.msra.mxu0 %v1439
    %1550 = vmatpush.bf16.msra.mxu0 %v1437
    %1551 = vmatpush.bf16.msra.mxu0 %v1435
    %1552 = vmatpush.bf16.msra.mxu0 %v1433
    %1553 = vmatpush.bf16.msra.mxu0 %v1431
    %1554 = vmatpush.bf16.msra.mxu0 %v1429
    %1555 = vmatpush.bf16.msra.mxu0 %v1427
    %1556 = vmatmul.bf16.gmra.mxu0 %v1250
    %v1557 = vpop.f32.mrf.mxu0
    %v1558 = vadd.f32 %v1485, %v1557
    %v1559 = vpop.f32.mrf.mxu0
    %v1560 = vadd.f32 %v1487, %v1559
    %1561 = vmatmul.bf16.gmra.mxu0 %v1252
    %v1562 = vpop.f32.mrf.mxu0
    %v1563 = vadd.f32 %v1490, %v1562
    %v1564 = vpop.f32.mrf.mxu0
    %v1565 = vadd.f32 %v1492, %v1564
    %1566 = vmatmul.bf16.gmra.mxu0 %v1254
    %v1567 = vpop.f32.mrf.mxu0
    %v1568 = vadd.f32 %v1495, %v1567
    %v1569 = vpop.f32.mrf.mxu0
    %v1570 = vadd.f32 %v1497, %v1569
    %1571 = vmatmul.bf16.gmra.mxu0 %v1256
    %v1572 = vpop.f32.mrf.mxu0
    %v1573 = vadd.f32 %v1500, %v1572
    %v1574 = vpop.f32.mrf.mxu0
    %v1575 = vadd.f32 %v1502, %v1574
    %1576 = vmatmul.bf16.gmra.mxu0 %v1258
    %v1577 = vpop.f32.mrf.mxu0
    %v1578 = vadd.f32 %v1505, %v1577
    %v1579 = vpop.f32.mrf.mxu0
    %v1580 = vadd.f32 %v1507, %v1579
    %1581 = vmatmul.bf16.gmra.mxu0 %v1260
    %v1582 = vpop.f32.mrf.mxu0
    %v1583 = vadd.f32 %v1510, %v1582
    %v1584 = vpop.f32.mrf.mxu0
    %v1585 = vadd.f32 %v1512, %v1584
    %1586 = vmatmul.bf16.gmra.mxu0 %v1262
    %v1587 = vpop.f32.mrf.mxu0
    %v1588 = vadd.f32 %v1515, %v1587
    %v1589 = vpop.f32.mrf.mxu0
    %v1590 = vadd.f32 %v1517, %v1589
    %1591 = vmatmul.bf16.gmra.mxu0 %v1264
    %v1592 = vpop.f32.mrf.mxu0
    %v1593 = vadd.f32 %v1520, %v1592
    %v1594 = vpop.f32.mrf.mxu0
    %v1595 = vadd.f32 %v1522, %v1594
    %1596 = vmatmul.bf16.gmra.mxu0 %v1266
    %v1597 = vpop.f32.mrf.mxu0
    %v1598 = vadd.f32 %v1525, %v1597
    %v1599 = vpop.f32.mrf.mxu0
    %v1600 = vadd.f32 %v1527, %v1599
    %1601 = vmatmul.bf16.gmra.mxu0 %v1268
    %v1602 = vpop.f32.mrf.mxu0
    %v1603 = vadd.f32 %v1530, %v1602
    %v1604 = vpop.f32.mrf.mxu0
    %v1605 = vadd.f32 %v1532, %v1604
    %1606 = vmatmul.bf16.gmra.mxu0 %v1270
    %v1607 = vpop.f32.mrf.mxu0
    %v1608 = vadd.f32 %v1535, %v1607
    %v1609 = vpop.f32.mrf.mxu0
    %v1610 = vadd.f32 %v1537, %v1609
    %1611 = vmatmul.bf16.gmra.mxu0 %v1272
    %v1612 = vpop.f32.mrf.mxu0
    %v1613 = vadd.f32 %v1540, %v1612
    %v1614 = vpop.f32.mrf.mxu0
    %v1615 = vadd.f32 %v1542, %v1614
    %1616 = vmatmul.bf16.gmra.mxu0 %v1274
    %v1617 = vpop.f32.mrf.mxu0
    %v1618 = vadd.f32 %v1545, %v1617
    %v1619 = vpop.f32.mrf.mxu0
    %1620 = vdwg.mxu0
    %1621 = vmatpush.bf16.msra.mxu0 %v1426
    %1622 = vmatpush.bf16.msra.mxu0 %v1424
    %1623 = vmatpush.bf16.msra.mxu0 %v1422
    %1624 = vmatpush.bf16.msra.mxu0 %v1420
    %1625 = vmatpush.bf16.msra.mxu0 %v1418
    %1626 = vmatpush.bf16.msra.mxu0 %v1416
    %1627 = vmatpush.bf16.msra.mxu0 %v1414
    %1628 = vmatpush.bf16.msra.mxu0 %v1412
    %1629 = vmatmul.bf16.gmra.mxu0 %v1249
    %v1630 = vpop.f32.mrf.mxu0
    %v1631 = vadd.f32 %v1314, %v1630
    %v1632 = vpop.f32.mrf.mxu0
    %v1633 = vadd.f32 %v1314, %v1632
    %1634 = vmatmul.bf16.gmra.mxu0 %v1251
    %v1635 = vpop.f32.mrf.mxu0
    %v1636 = vadd.f32 %v1314, %v1635
    %v1637 = vpop.f32.mrf.mxu0
    %v1638 = vadd.f32 %v1314, %v1637
    %1639 = vmatmul.bf16.gmra.mxu0 %v1253
    %v1640 = vpop.f32.mrf.mxu0
    %v1641 = vadd.f32 %v1314, %v1640
    %v1642 = vpop.f32.mrf.mxu0
    %v1643 = vadd.f32 %v1314, %v1642
    %1644 = vmatmul.bf16.gmra.mxu0 %v1255
    %v1645 = vpop.f32.mrf.mxu0
    %v1646 = vadd.f32 %v1314, %v1645
    %v1647 = vpop.f32.mrf.mxu0
    %v1648 = vadd.f32 %v1314, %v1647
    %1649 = vmatmul.bf16.gmra.mxu0 %v1257
    %v1650 = vpop.f32.mrf.mxu0
    %v1651 = vadd.f32 %v1314, %v1650
    %v1652 = vpop.f32.mrf.mxu0
    %v1653 = vadd.f32 %v1314, %v1652
    %1654 = vmatmul.bf16.gmra.mxu0 %v1259
    %v1655 = vpop.f32.mrf.mxu0
    %v1656 = vadd.f32 %v1314, %v1655
    %v1657 = vpop.f32.mrf.mxu0
    %v1658 = vadd.f32 %v1314, %v1657
    %1659 = vmatmul.bf16.gmra.mxu0 %v1261
    %v1660 = vpop.f32.mrf.mxu0
    %v1661 = vadd.f32 %v1314, %v1660
    %v1662 = vpop.f32.mrf.mxu0
    %v1663 = vadd.f32 %v1314, %v1662
    %1664 = vmatmul.bf16.gmra.mxu0 %v1263
    %v1665 = vpop.f32.mrf.mxu0
    %v1666 = vadd.f32 %v1314, %v1665
    %v1667 = vpop.f32.mrf.mxu0
    %v1668 = vadd.f32 %v1314, %v1667
    %1669 = vmatmul.bf16.gmra.mxu0 %v1265
    %v1670 = vpop.f32.mrf.mxu0
    %v1671 = vadd.f32 %v1314, %v1670
    %v1672 = vpop.f32.mrf.mxu0
    %v1673 = vadd.f32 %v1314, %v1672
    %1674 = vmatmul.bf16.gmra.mxu0 %v1267
    %v1675 = vpop.f32.mrf.mxu0
    %v1676 = vadd.f32 %v1314, %v1675
    %v1677 = vpop.f32.mrf.mxu0
    %v1678 = vadd.f32 %v1314, %v1677
    %1679 = vmatmul.bf16.gmra.mxu0 %v1269
    %v1680 = vpop.f32.mrf.mxu0
    %v1681 = vadd.f32 %v1314, %v1680
    %v1682 = vpop.f32.mrf.mxu0
    %v1683 = vadd.f32 %v1314, %v1682
    %1684 = vmatmul.bf16.gmra.mxu0 %v1271
    %v1685 = vpop.f32.mrf.mxu0
    %v1686 = vadd.f32 %v1314, %v1685
    %v1687 = vpop.f32.mrf.mxu0
    %v1688 = vadd.f32 %v1314, %v1687
    %1689 = vmatmul.bf16.gmra.mxu0 %v1273
    %v1690 = vpop.f32.mrf.mxu0
    %v1691 = vadd.f32 %v1314, %v1690
    %v1692 = vpop.f32.mrf.mxu0
    %1693 = vdwg.mxu0
    %1694 = vmatpush.bf16.msra.mxu0 %v1442
    %1695 = vmatpush.bf16.msra.mxu0 %v1440
    %1696 = vmatpush.bf16.msra.mxu0 %v1438
    %1697 = vmatpush.bf16.msra.mxu0 %v1436
    %1698 = vmatpush.bf16.msra.mxu0 %v1434
    %1699 = vmatpush.bf16.msra.mxu0 %v1432
    %1700 = vmatpush.bf16.msra.mxu0 %v1430
    %1701 = vmatpush.bf16.msra.mxu0 %v1428
    %1702 = vmatmul.bf16.gmra.mxu0 %v1250
    %v1703 = vpop.f32.mrf.mxu0
    %v1704 = vadd.f32 %v1631, %v1703
    %v1705 = vpop.f32.mrf.mxu0
    %v1706 = vadd.f32 %v1633, %v1705
    %1707 = vmatmul.bf16.gmra.mxu0 %v1252
    %v1708 = vpop.f32.mrf.mxu0
    %v1709 = vadd.f32 %v1636, %v1708
    %v1710 = vpop.f32.mrf.mxu0
    %v1711 = vadd.f32 %v1638, %v1710
    %1712 = vmatmul.bf16.gmra.mxu0 %v1254
    %v1713 = vpop.f32.mrf.mxu0
    %v1714 = vadd.f32 %v1641, %v1713
    %v1715 = vpop.f32.mrf.mxu0
    %v1716 = vadd.f32 %v1643, %v1715
    %1717 = vmatmul.bf16.gmra.mxu0 %v1256
    %v1718 = vpop.f32.mrf.mxu0
    %v1719 = vadd.f32 %v1646, %v1718
    %v1720 = vpop.f32.mrf.mxu0
    %v1721 = vadd.f32 %v1648, %v1720
    %1722 = vmatmul.bf16.gmra.mxu0 %v1258
    %v1723 = vpop.f32.mrf.mxu0
    %v1724 = vadd.f32 %v1651, %v1723
    %v1725 = vpop.f32.mrf.mxu0
    %v1726 = vadd.f32 %v1653, %v1725
    %1727 = vmatmul.bf16.gmra.mxu0 %v1260
    %v1728 = vpop.f32.mrf.mxu0
    %v1729 = vadd.f32 %v1656, %v1728
    %v1730 = vpop.f32.mrf.mxu0
    %v1731 = vadd.f32 %v1658, %v1730
    %1732 = vmatmul.bf16.gmra.mxu0 %v1262
    %v1733 = vpop.f32.mrf.mxu0
    %v1734 = vadd.f32 %v1661, %v1733
    %v1735 = vpop.f32.mrf.mxu0
    %v1736 = vadd.f32 %v1663, %v1735
    %1737 = vmatmul.bf16.gmra.mxu0 %v1264
    %v1738 = vpop.f32.mrf.mxu0
    %v1739 = vadd.f32 %v1666, %v1738
    %v1740 = vpop.f32.mrf.mxu0
    %v1741 = vadd.f32 %v1668, %v1740
    %1742 = vmatmul.bf16.gmra.mxu0 %v1266
    %v1743 = vpop.f32.mrf.mxu0
    %v1744 = vadd.f32 %v1671, %v1743
    %v1745 = vpop.f32.mrf.mxu0
    %v1746 = vadd.f32 %v1673, %v1745
    %1747 = vmatmul.bf16.gmra.mxu0 %v1268
    %v1748 = vpop.f32.mrf.mxu0
    %v1749 = vadd.f32 %v1676, %v1748
    %v1750 = vpop.f32.mrf.mxu0
    %v1751 = vadd.f32 %v1678, %v1750
    %1752 = vmatmul.bf16.gmra.mxu0 %v1270
    %v1753 = vpop.f32.mrf.mxu0
    %v1754 = vadd.f32 %v1681, %v1753
    %v1755 = vpop.f32.mrf.mxu0
    %v1756 = vadd.f32 %v1683, %v1755
    %1757 = vmatmul.bf16.gmra.mxu0 %v1272
    %v1758 = vpop.f32.mrf.mxu0
    %v1759 = vadd.f32 %v1686, %v1758
    %v1760 = vpop.f32.mrf.mxu0
    %v1761 = vadd.f32 %v1688, %v1760
    %1762 = vmatmul.bf16.gmra.mxu0 %v1274
    %v1763 = vpop.f32.mrf.mxu0
    %v1764 = vadd.f32 %v1691, %v1763
    %v1765 = vpop.f32.mrf.mxu0
    %1766 = vdwg.mxu0
    %v1767 = vadd.f32 %v1558, %v1704
    %1768 = vadd.xlane.f32.xlu0 %v1767
    %v1769 = vpop.xlane.xlu0 %1768
    %v1770 = vadd.f32 %v1560, %v1706
    %1771 = vadd.xlane.f32.xlu0 %v1770
    %v1772 = vpop.xlane.xlu0 %1771
    %v1773 = vadd.f32 %v1563, %v1709
    %1774 = vadd.xlane.f32.xlu0 %v1773
    %v1775 = vpop.xlane.xlu0 %1774
    %v1776 = vadd.f32 %v1565, %v1711
    %1777 = vadd.xlane.f32.xlu0 %v1776
    %v1778 = vpop.xlane.xlu0 %1777
    %v1779 = vadd.f32 %v1568, %v1714
    %1780 = vadd.xlane.f32.xlu0 %v1779
    %v1781 = vpop.xlane.xlu0 %1780
    %v1782 = vadd.f32 %v1570, %v1716
    %1783 = vadd.xlane.f32.xlu0 %v1782
    %v1784 = vpop.xlane.xlu0 %1783
    %v1785 = vadd.f32 %v1573, %v1719
    %1786 = vadd.xlane.f32.xlu0 %v1785
    %v1787 = vpop.xlane.xlu0 %1786
    %v1788 = vadd.f32 %v1575, %v1721
    %1789 = vadd.xlane.f32.xlu0 %v1788
    %v1790 = vpop.xlane.xlu0 %1789
    %v1791 = vadd.f32 %v1578, %v1724
    %1792 = vadd.xlane.f32.xlu0 %v1791
    %v1793 = vpop.xlane.xlu0 %1792
    %v1794 = vadd.f32 %v1580, %v1726
    %1795 = vadd.xlane.f32.xlu0 %v1794
    %v1796 = vpop.xlane.xlu0 %1795
    %v1797 = vadd.f32 %v1583, %v1729
    %1798 = vadd.xlane.f32.xlu0 %v1797
    %v1799 = vpop.xlane.xlu0 %1798
    %v1800 = vadd.f32 %v1585, %v1731
    %1801 = vadd.xlane.f32.xlu0 %v1800
    %v1802 = vpop.xlane.xlu0 %1801
    %v1803 = vadd.f32 %v1588, %v1734
    %1804 = vadd.xlane.f32.xlu0 %v1803
    %v1805 = vpop.xlane.xlu0 %1804
    %v1806 = vadd.f32 %v1590, %v1736
    %1807 = vadd.xlane.f32.xlu0 %v1806
    %v1808 = vpop.xlane.xlu0 %1807
    %v1809 = vadd.f32 %v1593, %v1739
    %1810 = vadd.xlane.f32.xlu0 %v1809
    %v1811 = vpop.xlane.xlu0 %1810
    %v1812 = vadd.f32 %v1595, %v1741
    %1813 = vadd.xlane.f32.xlu0 %v1812
    %v1814 = vpop.xlane.xlu0 %1813
    %v1815 = vadd.f32 %v1598, %v1744
    %1816 = vadd.xlane.f32.xlu0 %v1815
    %v1817 = vpop.xlane.xlu0 %1816
    %v1818 = vadd.f32 %v1600, %v1746
    %1819 = vadd.xlane.f32.xlu0 %v1818
    %v1820 = vpop.xlane.xlu0 %1819
    %v1821 = vadd.f32 %v1603, %v1749
    %1822 = vadd.xlane.f32.xlu0 %v1821
    %v1823 = vpop.xlane.xlu0 %1822
    %v1824 = vadd.f32 %v1605, %v1751
    %1825 = vadd.xlane.f32.xlu0 %v1824
    %v1826 = vpop.xlane.xlu0 %1825
    %v1827 = vadd.f32 %v1608, %v1754
    %1828 = vadd.xlane.f32.xlu0 %v1827
    %v1829 = vpop.xlane.xlu0 %1828
    %v1830 = vadd.f32 %v1610, %v1756
    %1831 = vadd.xlane.f32.xlu0 %v1830
    %v1832 = vpop.xlane.xlu0 %1831
    %v1833 = vadd.f32 %v1613, %v1759
    %1834 = vadd.xlane.f32.xlu0 %v1833
    %v1835 = vpop.xlane.xlu0 %1834
    %v1836 = vadd.f32 %v1615, %v1761
    %1837 = vadd.xlane.f32.xlu0 %v1836
    %v1838 = vpop.xlane.xlu0 %1837
    %v1839 = vadd.f32 %v1618, %v1764
    %1840 = vadd.xlane.f32.xlu0 %v1839
    %v1841 = vpop.xlane.xlu0 %1840
    %v1842 = vmul.f32 %v1769, %v486
    %v1843 = vmul.f32 %v1772, %v486
    %v1844 = vmul.f32 %v1775, %v486
    %v1845 = vmul.f32 %v1778, %v486
    %v1846 = vmul.f32 %v1781, %v486
    %v1847 = vmul.f32 %v1784, %v486
    %v1848 = vmul.f32 %v1787, %v486
    %v1849 = vmul.f32 %v1790, %v486
    %v1850 = vmul.f32 %v1793, %v486
    %v1851 = vmul.f32 %v1796, %v486
    %v1852 = vmul.f32 %v1799, %v486
    %v1853 = vmul.f32 %v1802, %v486
    %v1854 = vmul.f32 %v1805, %v486
    %v1855 = vmul.f32 %v1808, %v486
    %v1856 = vmul.f32 %v1811, %v486
    %v1857 = vmul.f32 %v1814, %v486
    %v1858 = vmul.f32 %v1817, %v486
    %v1859 = vmul.f32 %v1820, %v486
    %v1860 = vmul.f32 %v1823, %v486
    %v1861 = vmul.f32 %v1826, %v486
    %v1862 = vmul.f32 %v1829, %v486
    %v1863 = vmul.f32 %v1832, %v486
    %v1864 = vmul.f32 %v1835, %v486
    %v1865 = vmul.f32 %v1838, %v486
    %v1866 = vmul.f32 %v1841, %v486
    %v1867 = vmul.f32 %v1558, %v1558
    %v1868 = vmul.f32 %v1704, %v1704
    %v1869 = vmul.f32 %v1560, %v1560
    %v1870 = vmul.f32 %v1706, %v1706
    %v1871 = vmul.f32 %v1563, %v1563
    %v1872 = vmul.f32 %v1709, %v1709
    %v1873 = vmul.f32 %v1565, %v1565
    %v1874 = vmul.f32 %v1711, %v1711
    %v1875 = vmul.f32 %v1568, %v1568
    %v1876 = vmul.f32 %v1714, %v1714
    %v1877 = vmul.f32 %v1570, %v1570
    %v1878 = vmul.f32 %v1716, %v1716
    %v1879 = vmul.f32 %v1573, %v1573
    %v1880 = vmul.f32 %v1719, %v1719
    %v1881 = vmul.f32 %v1575, %v1575
    %v1882 = vmul.f32 %v1721, %v1721
    %v1883 = vmul.f32 %v1578, %v1578
    %v1884 = vmul.f32 %v1724, %v1724
    %v1885 = vmul.f32 %v1580, %v1580
    %v1886 = vmul.f32 %v1726, %v1726
    %v1887 = vmul.f32 %v1583, %v1583
    %v1888 = vmul.f32 %v1729, %v1729
    %v1889 = vmul.f32 %v1585, %v1585
    %v1890 = vmul.f32 %v1731, %v1731
    %v1891 = vmul.f32 %v1588, %v1588
    %v1892 = vmul.f32 %v1734, %v1734
    %v1893 = vmul.f32 %v1590, %v1590
    %v1894 = vmul.f32 %v1736, %v1736
    %v1895 = vmul.f32 %v1593, %v1593
    %v1896 = vmul.f32 %v1739, %v1739
    %v1897 = vmul.f32 %v1595, %v1595
    %v1898 = vmul.f32 %v1741, %v1741
    %v1899 = vmul.f32 %v1598, %v1598
    %v1900 = vmul.f32 %v1744, %v1744
    %v1901 = vmul.f32 %v1600, %v1600
    %v1902 = vmul.f32 %v1746, %v1746
    %v1903 = vmul.f32 %v1603, %v1603
    %v1904 = vmul.f32 %v1749, %v1749
    %v1905 = vmul.f32 %v1605, %v1605
    %v1906 = vmul.f32 %v1751, %v1751
    %v1907 = vmul.f32 %v1608, %v1608
    %v1908 = vmul.f32 %v1754, %v1754
    %v1909 = vmul.f32 %v1610, %v1610
    %v1910 = vmul.f32 %v1756, %v1756
    %v1911 = vmul.f32 %v1613, %v1613
    %v1912 = vmul.f32 %v1759, %v1759
    %v1913 = vmul.f32 %v1615, %v1615
    %v1914 = vmul.f32 %v1761, %v1761
    %v1915 = vmul.f32 %v1618, %v1618
    %v1916 = vmul.f32 %v1764, %v1764
    %v1917 = vadd.f32 %v1867, %v1868
    %1918 = vadd.xlane.f32.xlu0 %v1917
    %v1919 = vpop.xlane.xlu0 %1918
    %v1920 = vadd.f32 %v1869, %v1870
    %1921 = vadd.xlane.f32.xlu0 %v1920
    %v1922 = vpop.xlane.xlu0 %1921
    %v1923 = vadd.f32 %v1871, %v1872
    %1924 = vadd.xlane.f32.xlu0 %v1923
    %v1925 = vpop.xlane.xlu0 %1924
    %v1926 = vadd.f32 %v1873, %v1874
    %1927 = vadd.xlane.f32.xlu0 %v1926
    %v1928 = vpop.xlane.xlu0 %1927
    %v1929 = vadd.f32 %v1875, %v1876
    %1930 = vadd.xlane.f32.xlu0 %v1929
    %v1931 = vpop.xlane.xlu0 %1930
    %v1932 = vadd.f32 %v1877, %v1878
    %1933 = vadd.xlane.f32.xlu0 %v1932
    %v1934 = vpop.xlane.xlu0 %1933
    %v1935 = vadd.f32 %v1879, %v1880
    %1936 = vadd.xlane.f32.xlu0 %v1935
    %v1937 = vpop.xlane.xlu0 %1936
    %v1938 = vadd.f32 %v1881, %v1882
    %1939 = vadd.xlane.f32.xlu0 %v1938
    %v1940 = vpop.xlane.xlu0 %1939
    %v1941 = vadd.f32 %v1883, %v1884
    %1942 = vadd.xlane.f32.xlu0 %v1941
    %v1943 = vpop.xlane.xlu0 %1942
    %v1944 = vadd.f32 %v1885, %v1886
    %1945 = vadd.xlane.f32.xlu0 %v1944
    %v1946 = vpop.xlane.xlu0 %1945
    %v1947 = vadd.f32 %v1887, %v1888
    %1948 = vadd.xlane.f32.xlu0 %v1947
    %v1949 = vpop.xlane.xlu0 %1948
    %v1950 = vadd.f32 %v1889, %v1890
    %1951 = vadd.xlane.f32.xlu0 %v1950
    %v1952 = vpop.xlane.xlu0 %1951
    %v1953 = vadd.f32 %v1891, %v1892
    %1954 = vadd.xlane.f32.xlu0 %v1953
    %v1955 = vpop.xlane.xlu0 %1954
    %v1956 = vadd.f32 %v1893, %v1894
    %1957 = vadd.xlane.f32.xlu0 %v1956
    %v1958 = vpop.xlane.xlu0 %1957
    %v1959 = vadd.f32 %v1895, %v1896
    %1960 = vadd.xlane.f32.xlu0 %v1959
    %v1961 = vpop.xlane.xlu0 %1960
    %v1962 = vadd.f32 %v1897, %v1898
    %1963 = vadd.xlane.f32.xlu0 %v1962
    %v1964 = vpop.xlane.xlu0 %1963
    %v1965 = vadd.f32 %v1899, %v1900
    %1966 = vadd.xlane.f32.xlu0 %v1965
    %v1967 = vpop.xlane.xlu0 %1966
    %v1968 = vadd.f32 %v1901, %v1902
    %1969 = vadd.xlane.f32.xlu0 %v1968
    %v1970 = vpop.xlane.xlu0 %1969
    %v1971 = vadd.f32 %v1903, %v1904
    %1972 = vadd.xlane.f32.xlu0 %v1971
    %v1973 = vpop.xlane.xlu0 %1972
    %v1974 = vadd.f32 %v1905, %v1906
    %1975 = vadd.xlane.f32.xlu0 %v1974
    %v1976 = vpop.xlane.xlu0 %1975
    %v1977 = vadd.f32 %v1907, %v1908
    %1978 = vadd.xlane.f32.xlu0 %v1977
    %v1979 = vpop.xlane.xlu0 %1978
    %v1980 = vadd.f32 %v1909, %v1910
    %1981 = vadd.xlane.f32.xlu0 %v1980
    %v1982 = vpop.xlane.xlu0 %1981
    %v1983 = vadd.f32 %v1911, %v1912
    %1984 = vadd.xlane.f32.xlu0 %v1983
    %v1985 = vpop.xlane.xlu0 %1984
    %v1986 = vadd.f32 %v1913, %v1914
    %1987 = vadd.xlane.f32.xlu0 %v1986
    %v1988 = vpop.xlane.xlu0 %1987
    %v1989 = vadd.f32 %v1915, %v1916
    %1990 = vadd.xlane.f32.xlu0 %v1989
    %v1991 = vpop.xlane.xlu0 %1990
    %v1992 = vmul.f32 %v1919, %v486
    %v1993 = vmul.f32 %v1922, %v486
    %v1994 = vmul.f32 %v1925, %v486
    %v1995 = vmul.f32 %v1928, %v486
    %v1996 = vmul.f32 %v1931, %v486
    %v1997 = vmul.f32 %v1934, %v486
    %v1998 = vmul.f32 %v1937, %v486
    %v1999 = vmul.f32 %v1940, %v486
    %v2000 = vmul.f32 %v1943, %v486
    %v2001 = vmul.f32 %v1946, %v486
    %v2002 = vmul.f32 %v1949, %v486
    %v2003 = vmul.f32 %v1952, %v486
    %v2004 = vmul.f32 %v1955, %v486
    %v2005 = vmul.f32 %v1958, %v486
    %v2006 = vmul.f32 %v1961, %v486
    %v2007 = vmul.f32 %v1964, %v486
    %v2008 = vmul.f32 %v1967, %v486
    %v2009 = vmul.f32 %v1970, %v486
    %v2010 = vmul.f32 %v1973, %v486
    %v2011 = vmul.f32 %v1976, %v486
    %v2012 = vmul.f32 %v1979, %v486
    %v2013 = vmul.f32 %v1982, %v486
    %v2014 = vmul.f32 %v1985, %v486
    %v2015 = vmul.f32 %v1988, %v486
    %v2016 = vmul.f32 %v1991, %v486
    %v2017 = vmul.f32 %v1842, %v1842
    %v2018 = vmul.f32 %v1843, %v1843
    %v2019 = vmul.f32 %v1844, %v1844
    %v2020 = vmul.f32 %v1845, %v1845
    %v2021 = vmul.f32 %v1846, %v1846
    %v2022 = vmul.f32 %v1847, %v1847
    %v2023 = vmul.f32 %v1848, %v1848
    %v2024 = vmul.f32 %v1849, %v1849
    %v2025 = vmul.f32 %v1850, %v1850
    %v2026 = vmul.f32 %v1851, %v1851
    %v2027 = vmul.f32 %v1852, %v1852
    %v2028 = vmul.f32 %v1853, %v1853
    %v2029 = vmul.f32 %v1854, %v1854
    %v2030 = vmul.f32 %v1855, %v1855
    %v2031 = vmul.f32 %v1856, %v1856
    %v2032 = vmul.f32 %v1857, %v1857
    %v2033 = vmul.f32 %v1858, %v1858
    %v2034 = vmul.f32 %v1859, %v1859
    %v2035 = vmul.f32 %v1860, %v1860
    %v2036 = vmul.f32 %v1861, %v1861
    %v2037 = vmul.f32 %v1862, %v1862
    %v2038 = vmul.f32 %v1863, %v1863
    %v2039 = vmul.f32 %v1864, %v1864
    %v2040 = vmul.f32 %v1865, %v1865
    %v2041 = vmul.f32 %v1866, %v1866
    %v2042 = vsub.f32 %v1992, %v2017
    %v2043 = vsub.f32 %v1993, %v2018
    %v2044 = vsub.f32 %v1994, %v2019
    %v2045 = vsub.f32 %v1995, %v2020
    %v2046 = vsub.f32 %v1996, %v2021
    %v2047 = vsub.f32 %v1997, %v2022
    %v2048 = vsub.f32 %v1998, %v2023
    %v2049 = vsub.f32 %v1999, %v2024
    %v2050 = vsub.f32 %v2000, %v2025
    %v2051 = vsub.f32 %v2001, %v2026
    %v2052 = vsub.f32 %v2002, %v2027
    %v2053 = vsub.f32 %v2003, %v2028
    %v2054 = vsub.f32 %v2004, %v2029
    %v2055 = vsub.f32 %v2005, %v2030
    %v2056 = vsub.f32 %v2006, %v2031
    %v2057 = vsub.f32 %v2007, %v2032
    %v2058 = vsub.f32 %v2008, %v2033
    %v2059 = vsub.f32 %v2009, %v2034
    %v2060 = vsub.f32 %v2010, %v2035
    %v2061 = vsub.f32 %v2011, %v2036
    %v2062 = vsub.f32 %v2012, %v2037
    %v2063 = vsub.f32 %v2013, %v2038
    %v2064 = vsub.f32 %v2014, %v2039
    %v2065 = vsub.f32 %v2015, %v2040
    %v2066 = vsub.f32 %v2016, %v2041
    %v2067 = vsub.f32 %v1558, %v1842
    %v2068 = vsub.f32 %v1704, %v1842
    %v2069 = vsub.f32 %v1560, %v1843
    %v2070 = vsub.f32 %v1706, %v1843
    %v2071 = vsub.f32 %v1563, %v1844
    %v2072 = vsub.f32 %v1709, %v1844
    %v2073 = vsub.f32 %v1565, %v1845
    %v2074 = vsub.f32 %v1711, %v1845
    %v2075 = vsub.f32 %v1568, %v1846
    %v2076 = vsub.f32 %v1714, %v1846
    %v2077 = vsub.f32 %v1570, %v1847
    %v2078 = vsub.f32 %v1716, %v1847
    %v2079 = vsub.f32 %v1573, %v1848
    %v2080 = vsub.f32 %v1719, %v1848
    %v2081 = vsub.f32 %v1575, %v1849
    %v2082 = vsub.f32 %v1721, %v1849
    %v2083 = vsub.f32 %v1578, %v1850
    %v2084 = vsub.f32 %v1724, %v1850
    %v2085 = vsub.f32 %v1580, %v1851
    %v2086 = vsub.f32 %v1726, %v1851
    %v2087 = vsub.f32 %v1583, %v1852
    %v2088 = vsub.f32 %v1729, %v1852
    %v2089 = vsub.f32 %v1585, %v1853
    %v2090 = vsub.f32 %v1731, %v1853
    %v2091 = vsub.f32 %v1588, %v1854
    %v2092 = vsub.f32 %v1734, %v1854
    %v2093 = vsub.f32 %v1590, %v1855
    %v2094 = vsub.f32 %v1736, %v1855
    %v2095 = vsub.f32 %v1593, %v1856
    %v2096 = vsub.f32 %v1739, %v1856
    %v2097 = vsub.f32 %v1595, %v1857
    %v2098 = vsub.f32 %v1741, %v1857
    %v2099 = vsub.f32 %v1598, %v1858
    %v2100 = vsub.f32 %v1744, %v1858
    %v2101 = vsub.f32 %v1600, %v1859
    %v2102 = vsub.f32 %v1746, %v1859
    %v2103 = vsub.f32 %v1603, %v1860
    %v2104 = vsub.f32 %v1749, %v1860
    %v2105 = vsub.f32 %v1605, %v1861
    %v2106 = vsub.f32 %v1751, %v1861
    %v2107 = vsub.f32 %v1608, %v1862
    %v2108 = vsub.f32 %v1754, %v1862
    %v2109 = vsub.f32 %v1610, %v1863
    %v2110 = vsub.f32 %v1756, %v1863
    %v2111 = vsub.f32 %v1613, %v1864
    %v2112 = vsub.f32 %v1759, %v1864
    %v2113 = vsub.f32 %v1615, %v1865
    %v2114 = vsub.f32 %v1761, %v1865
    %v2115 = vsub.f32 %v1618, %v1866
    %v2116 = vsub.f32 %v1764, %v1866
    %v2117 = vadd.f32 %v2042, 1e-05
    %v2118 = vadd.f32 %v2043, 1e-05
    %v2119 = vadd.f32 %v2044, 1e-05
    %v2120 = vadd.f32 %v2045, 1e-05
    %v2121 = vadd.f32 %v2046, 1e-05
    %v2122 = vadd.f32 %v2047, 1e-05
    %v2123 = vadd.f32 %v2048, 1e-05
    %v2124 = vadd.f32 %v2049, 1e-05
    %v2125 = vadd.f32 %v2050, 1e-05
    %v2126 = vadd.f32 %v2051, 1e-05
    %v2127 = vadd.f32 %v2052, 1e-05
    %v2128 = vadd.f32 %v2053, 1e-05
    %v2129 = vadd.f32 %v2054, 1e-05
    %v2130 = vadd.f32 %v2055, 1e-05
    %v2131 = vadd.f32 %v2056, 1e-05
    %v2132 = vadd.f32 %v2057, 1e-05
    %v2133 = vadd.f32 %v2058, 1e-05
    %v2134 = vadd.f32 %v2059, 1e-05
    %v2135 = vadd.f32 %v2060, 1e-05
    %v2136 = vadd.f32 %v2061, 1e-05
    %v2137 = vadd.f32 %v2062, 1e-05
    %v2138 = vadd.f32 %v2063, 1e-05
    %v2139 = vadd.f32 %v2064, 1e-05
    %v2140 = vadd.f32 %v2065, 1e-05
    %v2141 = vadd.f32 %v2066, 1e-05
    %v2142 = vrsqrt.pop %v2117
    %v2143 = vmul.f32 %v2142, %v2117
    %v2144 = vmul.f32 %v2143, %v2142
    %v2145 = vmul.f32 0.5, %v2144
    %v2146 = vsub.f32 1.5, %v2145
    %v2147 = vmul.f32 %v2142, %v2146
    %vm2148 = vweird.f32 %v2117
    %vm2149 = vweird.f32 %v2142
    %vm2150 = vmor %vm2148, %vm2149
    %v2151 = vsel %vm2150, %v2142, %v2147
    %v2152 = vrsqrt.pop %v2118
    %v2153 = vmul.f32 %v2152, %v2118
    %v2154 = vmul.f32 %v2153, %v2152
    %v2155 = vmul.f32 0.5, %v2154
    %v2156 = vsub.f32 1.5, %v2155
    %v2157 = vmul.f32 %v2152, %v2156
    %vm2158 = vweird.f32 %v2118
    %vm2159 = vweird.f32 %v2152
    %vm2160 = vmor %vm2158, %vm2159
    %v2161 = vsel %vm2160, %v2152, %v2157
    %v2162 = vrsqrt.pop %v2119
    %v2163 = vmul.f32 %v2162, %v2119
    %v2164 = vmul.f32 %v2163, %v2162
    %v2165 = vmul.f32 0.5, %v2164
    %v2166 = vsub.f32 1.5, %v2165
    %v2167 = vmul.f32 %v2162, %v2166
    %vm2168 = vweird.f32 %v2119
    %vm2169 = vweird.f32 %v2162
    %vm2170 = vmor %vm2168, %vm2169
    %v2171 = vsel %vm2170, %v2162, %v2167
    %v2172 = vrsqrt.pop %v2120
    %v2173 = vmul.f32 %v2172, %v2120
    %v2174 = vmul.f32 %v2173, %v2172
    %v2175 = vmul.f32 0.5, %v2174
    %v2176 = vsub.f32 1.5, %v2175
    %v2177 = vmul.f32 %v2172, %v2176
    %vm2178 = vweird.f32 %v2120
    %vm2179 = vweird.f32 %v2172
    %vm2180 = vmor %vm2178, %vm2179
    %v2181 = vsel %vm2180, %v2172, %v2177
    %v2182 = vrsqrt.pop %v2121
    %v2183 = vmul.f32 %v2182, %v2121
    %v2184 = vmul.f32 %v2183, %v2182
    %v2185 = vmul.f32 0.5, %v2184
    %v2186 = vsub.f32 1.5, %v2185
    %v2187 = vmul.f32 %v2182, %v2186
    %vm2188 = vweird.f32 %v2121
    %vm2189 = vweird.f32 %v2182
    %vm2190 = vmor %vm2188, %vm2189
    %v2191 = vsel %vm2190, %v2182, %v2187
    %v2192 = vrsqrt.pop %v2122
    %v2193 = vmul.f32 %v2192, %v2122
    %v2194 = vmul.f32 %v2193, %v2192
    %v2195 = vmul.f32 0.5, %v2194
    %v2196 = vsub.f32 1.5, %v2195
    %v2197 = vmul.f32 %v2192, %v2196
    %vm2198 = vweird.f32 %v2122
    %vm2199 = vweird.f32 %v2192
    %vm2200 = vmor %vm2198, %vm2199
    %v2201 = vsel %vm2200, %v2192, %v2197
    %v2202 = vrsqrt.pop %v2123
    %v2203 = vmul.f32 %v2202, %v2123
    %v2204 = vmul.f32 %v2203, %v2202
    %v2205 = vmul.f32 0.5, %v2204
    %v2206 = vsub.f32 1.5, %v2205
    %v2207 = vmul.f32 %v2202, %v2206
    %vm2208 = vweird.f32 %v2123
    %vm2209 = vweird.f32 %v2202
    %vm2210 = vmor %vm2208, %vm2209
    %v2211 = vsel %vm2210, %v2202, %v2207
    %v2212 = vrsqrt.pop %v2124
    %v2213 = vmul.f32 %v2212, %v2124
    %v2214 = vmul.f32 %v2213, %v2212
    %v2215 = vmul.f32 0.5, %v2214
    %v2216 = vsub.f32 1.5, %v2215
    %v2217 = vmul.f32 %v2212, %v2216
    %vm2218 = vweird.f32 %v2124
    %vm2219 = vweird.f32 %v2212
    %vm2220 = vmor %vm2218, %vm2219
    %v2221 = vsel %vm2220, %v2212, %v2217
    %v2222 = vrsqrt.pop %v2125
    %v2223 = vmul.f32 %v2222, %v2125
    %v2224 = vmul.f32 %v2223, %v2222
    %v2225 = vmul.f32 0.5, %v2224
    %v2226 = vsub.f32 1.5, %v2225
    %v2227 = vmul.f32 %v2222, %v2226
    %vm2228 = vweird.f32 %v2125
    %vm2229 = vweird.f32 %v2222
    %vm2230 = vmor %vm2228, %vm2229
    %v2231 = vsel %vm2230, %v2222, %v2227
    %v2232 = vrsqrt.pop %v2126
    %v2233 = vmul.f32 %v2232, %v2126
    %v2234 = vmul.f32 %v2233, %v2232
    %v2235 = vmul.f32 0.5, %v2234
    %v2236 = vsub.f32 1.5, %v2235
    %v2237 = vmul.f32 %v2232, %v2236
    %vm2238 = vweird.f32 %v2126
    %vm2239 = vweird.f32 %v2232
    %vm2240 = vmor %vm2238, %vm2239
    %v2241 = vsel %vm2240, %v2232, %v2237
    %v2242 = vrsqrt.pop %v2127
    %v2243 = vmul.f32 %v2242, %v2127
    %v2244 = vmul.f32 %v2243, %v2242
    %v2245 = vmul.f32 0.5, %v2244
    %v2246 = vsub.f32 1.5, %v2245
    %v2247 = vmul.f32 %v2242, %v2246
    %vm2248 = vweird.f32 %v2127
    %vm2249 = vweird.f32 %v2242
    %vm2250 = vmor %vm2248, %vm2249
    %v2251 = vsel %vm2250, %v2242, %v2247
    %v2252 = vrsqrt.pop %v2128
    %v2253 = vmul.f32 %v2252, %v2128
    %v2254 = vmul.f32 %v2253, %v2252
    %v2255 = vmul.f32 0.5, %v2254
    %v2256 = vsub.f32 1.5, %v2255
    %v2257 = vmul.f32 %v2252, %v2256
    %vm2258 = vweird.f32 %v2128
    %vm2259 = vweird.f32 %v2252
    %vm2260 = vmor %vm2258, %vm2259
    %v2261 = vsel %vm2260, %v2252, %v2257
    %v2262 = vrsqrt.pop %v2129
    %v2263 = vmul.f32 %v2262, %v2129
    %v2264 = vmul.f32 %v2263, %v2262
    %v2265 = vmul.f32 0.5, %v2264
    %v2266 = vsub.f32 1.5, %v2265
    %v2267 = vmul.f32 %v2262, %v2266
    %vm2268 = vweird.f32 %v2129
    %vm2269 = vweird.f32 %v2262
    %vm2270 = vmor %vm2268, %vm2269
    %v2271 = vsel %vm2270, %v2262, %v2267
    %v2272 = vrsqrt.pop %v2130
    %v2273 = vmul.f32 %v2272, %v2130
    %v2274 = vmul.f32 %v2273, %v2272
    %v2275 = vmul.f32 0.5, %v2274
    %v2276 = vsub.f32 1.5, %v2275
    %v2277 = vmul.f32 %v2272, %v2276
    %vm2278 = vweird.f32 %v2130
    %vm2279 = vweird.f32 %v2272
    %vm2280 = vmor %vm2278, %vm2279
    %v2281 = vsel %vm2280, %v2272, %v2277
    %v2282 = vrsqrt.pop %v2131
    %v2283 = vmul.f32 %v2282, %v2131
    %v2284 = vmul.f32 %v2283, %v2282
    %v2285 = vmul.f32 0.5, %v2284
    %v2286 = vsub.f32 1.5, %v2285
    %v2287 = vmul.f32 %v2282, %v2286
    %vm2288 = vweird.f32 %v2131
    %vm2289 = vweird.f32 %v2282
    %vm2290 = vmor %vm2288, %vm2289
    %v2291 = vsel %vm2290, %v2282, %v2287
    %v2292 = vrsqrt.pop %v2132
    %v2293 = vmul.f32 %v2292, %v2132
    %v2294 = vmul.f32 %v2293, %v2292
    %v2295 = vmul.f32 0.5, %v2294
    %v2296 = vsub.f32 1.5, %v2295
    %v2297 = vmul.f32 %v2292, %v2296
    %vm2298 = vweird.f32 %v2132
    %vm2299 = vweird.f32 %v2292
    %vm2300 = vmor %vm2298, %vm2299
    %v2301 = vsel %vm2300, %v2292, %v2297
    %v2302 = vrsqrt.pop %v2133
    %v2303 = vmul.f32 %v2302, %v2133
    %v2304 = vmul.f32 %v2303, %v2302
    %v2305 = vmul.f32 0.5, %v2304
    %v2306 = vsub.f32 1.5, %v2305
    %v2307 = vmul.f32 %v2302, %v2306
    %vm2308 = vweird.f32 %v2133
    %vm2309 = vweird.f32 %v2302
    %vm2310 = vmor %vm2308, %vm2309
    %v2311 = vsel %vm2310, %v2302, %v2307
    %v2312 = vrsqrt.pop %v2134
    %v2313 = vmul.f32 %v2312, %v2134
    %v2314 = vmul.f32 %v2313, %v2312
    %v2315 = vmul.f32 0.5, %v2314
    %v2316 = vsub.f32 1.5, %v2315
    %v2317 = vmul.f32 %v2312, %v2316
    %vm2318 = vweird.f32 %v2134
    %vm2319 = vweird.f32 %v2312
    %vm2320 = vmor %vm2318, %vm2319
    %v2321 = vsel %vm2320, %v2312, %v2317
    %v2322 = vrsqrt.pop %v2135
    %v2323 = vmul.f32 %v2322, %v2135
    %v2324 = vmul.f32 %v2323, %v2322
    %v2325 = vmul.f32 0.5, %v2324
    %v2326 = vsub.f32 1.5, %v2325
    %v2327 = vmul.f32 %v2322, %v2326
    %vm2328 = vweird.f32 %v2135
    %vm2329 = vweird.f32 %v2322
    %vm2330 = vmor %vm2328, %vm2329
    %v2331 = vsel %vm2330, %v2322, %v2327
    %v2332 = vrsqrt.pop %v2136
    %v2333 = vmul.f32 %v2332, %v2136
    %v2334 = vmul.f32 %v2333, %v2332
    %v2335 = vmul.f32 0.5, %v2334
    %v2336 = vsub.f32 1.5, %v2335
    %v2337 = vmul.f32 %v2332, %v2336
    %vm2338 = vweird.f32 %v2136
    %vm2339 = vweird.f32 %v2332
    %vm2340 = vmor %vm2338, %vm2339
    %v2341 = vsel %vm2340, %v2332, %v2337
    %v2342 = vrsqrt.pop %v2137
    %v2343 = vmul.f32 %v2342, %v2137
    %v2344 = vmul.f32 %v2343, %v2342
    %v2345 = vmul.f32 0.5, %v2344
    %v2346 = vsub.f32 1.5, %v2345
    %v2347 = vmul.f32 %v2342, %v2346
    %vm2348 = vweird.f32 %v2137
    %vm2349 = vweird.f32 %v2342
    %vm2350 = vmor %vm2348, %vm2349
    %v2351 = vsel %vm2350, %v2342, %v2347
    %v2352 = vrsqrt.pop %v2138
    %v2353 = vmul.f32 %v2352, %v2138
    %v2354 = vmul.f32 %v2353, %v2352
    %v2355 = vmul.f32 0.5, %v2354
    %v2356 = vsub.f32 1.5, %v2355
    %v2357 = vmul.f32 %v2352, %v2356
    %vm2358 = vweird.f32 %v2138
    %vm2359 = vweird.f32 %v2352
    %vm2360 = vmor %vm2358, %vm2359
    %v2361 = vsel %vm2360, %v2352, %v2357
    %v2362 = vrsqrt.pop %v2139
    %v2363 = vmul.f32 %v2362, %v2139
    %v2364 = vmul.f32 %v2363, %v2362
    %v2365 = vmul.f32 0.5, %v2364
    %v2366 = vsub.f32 1.5, %v2365
    %v2367 = vmul.f32 %v2362, %v2366
    %vm2368 = vweird.f32 %v2139
    %vm2369 = vweird.f32 %v2362
    %vm2370 = vmor %vm2368, %vm2369
    %v2371 = vsel %vm2370, %v2362, %v2367
    %v2372 = vrsqrt.pop %v2140
    %v2373 = vmul.f32 %v2372, %v2140
    %v2374 = vmul.f32 %v2373, %v2372
    %v2375 = vmul.f32 0.5, %v2374
    %v2376 = vsub.f32 1.5, %v2375
    %v2377 = vmul.f32 %v2372, %v2376
    %vm2378 = vweird.f32 %v2140
    %vm2379 = vweird.f32 %v2372
    %vm2380 = vmor %vm2378, %vm2379
    %v2381 = vsel %vm2380, %v2372, %v2377
    %v2382 = vrsqrt.pop %v2141
    %v2383 = vmul.f32 %v2382, %v2141
    %v2384 = vmul.f32 %v2383, %v2382
    %v2385 = vmul.f32 0.5, %v2384
    %v2386 = vsub.f32 1.5, %v2385
    %v2387 = vmul.f32 %v2382, %v2386
    %vm2388 = vweird.f32 %v2141
    %vm2389 = vweird.f32 %v2382
    %vm2390 = vmor %vm2388, %vm2389
    %v2391 = vsel %vm2390, %v2382, %v2387
    %v2392 = vmul.f32 %v2067, %v2151
    %v2393 = vmul.f32 %v2068, %v2151
    %v2394 = vmul.f32 %v2069, %v2161
    %v2395 = vmul.f32 %v2070, %v2161
    %v2396 = vmul.f32 %v2071, %v2171
    %v2397 = vmul.f32 %v2072, %v2171
    %v2398 = vmul.f32 %v2073, %v2181
    %v2399 = vmul.f32 %v2074, %v2181
    %v2400 = vmul.f32 %v2075, %v2191
    %v2401 = vmul.f32 %v2076, %v2191
    %v2402 = vmul.f32 %v2077, %v2201
    %v2403 = vmul.f32 %v2078, %v2201
    %v2404 = vmul.f32 %v2079, %v2211
    %v2405 = vmul.f32 %v2080, %v2211
    %v2406 = vmul.f32 %v2081, %v2221
    %v2407 = vmul.f32 %v2082, %v2221
    %v2408 = vmul.f32 %v2083, %v2231
    %v2409 = vmul.f32 %v2084, %v2231
    %v2410 = vmul.f32 %v2085, %v2241
    %v2411 = vmul.f32 %v2086, %v2241
    %v2412 = vmul.f32 %v2087, %v2251
    %v2413 = vmul.f32 %v2088, %v2251
    %v2414 = vmul.f32 %v2089, %v2261
    %v2415 = vmul.f32 %v2090, %v2261
    %v2416 = vmul.f32 %v2091, %v2271
    %v2417 = vmul.f32 %v2092, %v2271
    %v2418 = vmul.f32 %v2093, %v2281
    %v2419 = vmul.f32 %v2094, %v2281
    %v2420 = vmul.f32 %v2095, %v2291
    %v2421 = vmul.f32 %v2096, %v2291
    %v2422 = vmul.f32 %v2097, %v2301
    %v2423 = vmul.f32 %v2098, %v2301
    %v2424 = vmul.f32 %v2099, %v2311
    %v2425 = vmul.f32 %v2100, %v2311
    %v2426 = vmul.f32 %v2101, %v2321
    %v2427 = vmul.f32 %v2102, %v2321
    %v2428 = vmul.f32 %v2103, %v2331
    %v2429 = vmul.f32 %v2104, %v2331
    %v2430 = vmul.f32 %v2105, %v2341
    %v2431 = vmul.f32 %v2106, %v2341
    %v2432 = vmul.f32 %v2107, %v2351
    %v2433 = vmul.f32 %v2108, %v2351
    %v2434 = vmul.f32 %v2109, %v2361
    %v2435 = vmul.f32 %v2110, %v2361
    %v2436 = vmul.f32 %v2111, %v2371
    %v2437 = vmul.f32 %v2112, %v2371
    %v2438 = vmul.f32 %v2113, %v2381
    %v2439 = vmul.f32 %v2114, %v2381
    %v2440 = vmul.f32 %v2115, %v2391
    %v2441 = vmul.f32 %v2116, %v2391
    %v2442 = vperm.slane %v1307, 1
    %v2443 = vperm.slane %v1307, 5
    %v2446 = vperm.slane %v2442, 1
    %v2447 = vperm.slane %v2443, 1
    %v2448 = vmul.f32 %v2392, %v2446
    %v2449 = vmul.f32 %v2393, %v2447
    %v2450 = vmul.f32 %v2394, %v2446
    %v2451 = vmul.f32 %v2395, %v2447
    %v2452 = vmul.f32 %v2396, %v2446
    %v2453 = vmul.f32 %v2397, %v2447
    %v2454 = vmul.f32 %v2398, %v2446
    %v2455 = vmul.f32 %v2399, %v2447
    %v2456 = vmul.f32 %v2400, %v2446
    %v2457 = vmul.f32 %v2401, %v2447
    %v2458 = vmul.f32 %v2402, %v2446
    %v2459 = vmul.f32 %v2403, %v2447
    %v2460 = vmul.f32 %v2404, %v2446
    %v2461 = vmul.f32 %v2405, %v2447
    %v2462 = vmul.f32 %v2406, %v2446
    %v2463 = vmul.f32 %v2407, %v2447
    %v2464 = vmul.f32 %v2408, %v2446
    %v2465 = vmul.f32 %v2409, %v2447
    %v2466 = vmul.f32 %v2410, %v2446
    %v2467 = vmul.f32 %v2411, %v2447
    %v2468 = vmul.f32 %v2412, %v2446
    %v2469 = vmul.f32 %v2413, %v2447
    %v2470 = vmul.f32 %v2414, %v2446
    %v2471 = vmul.f32 %v2415, %v2447
    %v2472 = vmul.f32 %v2416, %v2446
    %v2473 = vmul.f32 %v2417, %v2447
    %v2474 = vmul.f32 %v2418, %v2446
    %v2475 = vmul.f32 %v2419, %v2447
    %v2476 = vmul.f32 %v2420, %v2446
    %v2477 = vmul.f32 %v2421, %v2447
    %v2478 = vmul.f32 %v2422, %v2446
    %v2479 = vmul.f32 %v2423, %v2447
    %v2480 = vmul.f32 %v2424, %v2446
    %v2481 = vmul.f32 %v2425, %v2447
    %v2482 = vmul.f32 %v2426, %v2446
    %v2483 = vmul.f32 %v2427, %v2447
    %v2484 = vmul.f32 %v2428, %v2446
    %v2485 = vmul.f32 %v2429, %v2447
    %v2486 = vmul.f32 %v2430, %v2446
    %v2487 = vmul.f32 %v2431, %v2447
    %v2488 = vmul.f32 %v2432, %v2446
    %v2489 = vmul.f32 %v2433, %v2447
    %v2490 = vmul.f32 %v2434, %v2446
    %v2491 = vmul.f32 %v2435, %v2447
    %v2492 = vmul.f32 %v2436, %v2446
    %v2493 = vmul.f32 %v2437, %v2447
    %v2494 = vmul.f32 %v2438, %v2446
    %v2495 = vmul.f32 %v2439, %v2447
    %v2496 = vmul.f32 %v2440, %v2446
    %v2497 = vmul.f32 %v2441, %v2447
    %v2498 = vperm.slane %v1307, 2
    %v2499 = vperm.slane %v1307, 6
    %v2502 = vperm.slane %v2498, 2
    %v2503 = vperm.slane %v2499, 2
    %v2504 = vadd.f32 %v2448, %v2502
    %v2505 = vadd.f32 %v2449, %v2503
    %v2506 = vadd.f32 %v2450, %v2502
    %v2507 = vadd.f32 %v2451, %v2503
    %v2508 = vadd.f32 %v2452, %v2502
    %v2509 = vadd.f32 %v2453, %v2503
    %v2510 = vadd.f32 %v2454, %v2502
    %v2511 = vadd.f32 %v2455, %v2503
    %v2512 = vadd.f32 %v2456, %v2502
    %v2513 = vadd.f32 %v2457, %v2503
    %v2514 = vadd.f32 %v2458, %v2502
    %v2515 = vadd.f32 %v2459, %v2503
    %v2516 = vadd.f32 %v2460, %v2502
    %v2517 = vadd.f32 %v2461, %v2503
    %v2518 = vadd.f32 %v2462, %v2502
    %v2519 = vadd.f32 %v2463, %v2503
    %v2520 = vadd.f32 %v2464, %v2502
    %v2521 = vadd.f32 %v2465, %v2503
    %v2522 = vadd.f32 %v2466, %v2502
    %v2523 = vadd.f32 %v2467, %v2503
    %v2524 = vadd.f32 %v2468, %v2502
    %v2525 = vadd.f32 %v2469, %v2503
    %v2526 = vadd.f32 %v2470, %v2502
    %v2527 = vadd.f32 %v2471, %v2503
    %v2528 = vadd.f32 %v2472, %v2502
    %v2529 = vadd.f32 %v2473, %v2503
    %v2530 = vadd.f32 %v2474, %v2502
    %v2531 = vadd.f32 %v2475, %v2503
    %v2532 = vadd.f32 %v2476, %v2502
    %v2533 = vadd.f32 %v2477, %v2503
    %v2534 = vadd.f32 %v2478, %v2502
    %v2535 = vadd.f32 %v2479, %v2503
    %v2536 = vadd.f32 %v2480, %v2502
    %v2537 = vadd.f32 %v2481, %v2503
    %v2538 = vadd.f32 %v2482, %v2502
    %v2539 = vadd.f32 %v2483, %v2503
    %v2540 = vadd.f32 %v2484, %v2502
    %v2541 = vadd.f32 %v2485, %v2503
    %v2542 = vadd.f32 %v2486, %v2502
    %v2543 = vadd.f32 %v2487, %v2503
    %v2544 = vadd.f32 %v2488, %v2502
    %v2545 = vadd.f32 %v2489, %v2503
    %v2546 = vadd.f32 %v2490, %v2502
    %v2547 = vadd.f32 %v2491, %v2503
    %v2548 = vadd.f32 %v2492, %v2502
    %v2549 = vadd.f32 %v2493, %v2503
    %v2550 = vadd.f32 %v2494, %v2502
    %v2551 = vadd.f32 %v2495, %v2503
    %v2552 = vadd.f32 %v2496, %v2502
    %v2553 = vadd.f32 %v2497, %v2503
    %v2554 = vmax.f32 %v2504, 0.0
    %v2555 = vmax.f32 %v2505, 0.0
    %v2556 = vmax.f32 %v2506, 0.0
    %v2557 = vmax.f32 %v2507, 0.0
    %v2558 = vmax.f32 %v2508, 0.0
    %v2559 = vmax.f32 %v2509, 0.0
    %v2560 = vmax.f32 %v2510, 0.0
    %v2561 = vmax.f32 %v2511, 0.0
    %v2562 = vmax.f32 %v2512, 0.0
    %v2563 = vmax.f32 %v2513, 0.0
    %v2564 = vmax.f32 %v2514, 0.0
    %v2565 = vmax.f32 %v2515, 0.0
    %v2566 = vmax.f32 %v2516, 0.0
    %v2567 = vmax.f32 %v2517, 0.0
    %v2568 = vmax.f32 %v2518, 0.0
    %v2569 = vmax.f32 %v2519, 0.0
    %v2570 = vmax.f32 %v2520, 0.0
    %v2571 = vmax.f32 %v2521, 0.0
    %v2572 = vmax.f32 %v2522, 0.0
    %v2573 = vmax.f32 %v2523, 0.0
    %v2574 = vmax.f32 %v2524, 0.0
    %v2575 = vmax.f32 %v2525, 0.0
    %v2576 = vmax.f32 %v2526, 0.0
    %v2577 = vmax.f32 %v2527, 0.0
    %v2578 = vmax.f32 %v2528, 0.0
    %v2579 = vmax.f32 %v2529, 0.0
    %v2580 = vmax.f32 %v2530, 0.0
    %v2581 = vmax.f32 %v2531, 0.0
    %v2582 = vmax.f32 %v2532, 0.0
    %v2583 = vmax.f32 %v2533, 0.0
    %v2584 = vmax.f32 %v2534, 0.0
    %v2585 = vmax.f32 %v2535, 0.0
    %v2586 = vmax.f32 %v2536, 0.0
    %v2587 = vmax.f32 %v2537, 0.0
    %v2588 = vmax.f32 %v2538, 0.0
    %v2589 = vmax.f32 %v2539, 0.0
    %v2590 = vmax.f32 %v2540, 0.0
    %v2591 = vmax.f32 %v2541, 0.0
    %v2592 = vmax.f32 %v2542, 0.0
    %v2593 = vmax.f32 %v2543, 0.0
    %v2594 = vmax.f32 %v2544, 0.0
    %v2595 = vmax.f32 %v2545, 0.0
    %v2596 = vmax.f32 %v2546, 0.0
    %v2597 = vmax.f32 %v2547, 0.0
    %v2598 = vmax.f32 %v2548, 0.0
    %v2599 = vmax.f32 %v2549, 0.0
    %v2600 = vmax.f32 %v2550, 0.0
    %v2601 = vmax.f32 %v2551, 0.0
    %v2602 = vmax.f32 %v2552, 0.0
    %v2603 = vmax.f32 %v2553, 0.0
    %v2604 = vpack.c.bf16 %v2556, %v2554
    %v2605 = vpack.c.bf16 %v2557, %v2555
    %v2606 = vpack.c.bf16 %v2560, %v2558
    %v2607 = vpack.c.bf16 %v2561, %v2559
    %v2608 = vpack.c.bf16 %v2564, %v2562
    %v2609 = vpack.c.bf16 %v2565, %v2563
    %v2610 = vpack.c.bf16 %v2568, %v2566
    %v2611 = vpack.c.bf16 %v2569, %v2567
    %v2612 = vpack.c.bf16 %v2572, %v2570
    %v2613 = vpack.c.bf16 %v2573, %v2571
    %v2614 = vpack.c.bf16 %v2576, %v2574
    %v2615 = vpack.c.bf16 %v2577, %v2575
    %v2616 = vpack.c.bf16 %v2580, %v2578
    %v2617 = vpack.c.bf16 %v2581, %v2579
    %v2618 = vpack.c.bf16 %v2584, %v2582
    %v2619 = vpack.c.bf16 %v2585, %v2583
    %v2620 = vpack.c.bf16 %v2588, %v2586
    %v2621 = vpack.c.bf16 %v2589, %v2587
    %v2622 = vpack.c.bf16 %v2592, %v2590
    %v2623 = vpack.c.bf16 %v2593, %v2591
    %v2624 = vpack.c.bf16 %v2596, %v2594
    %v2625 = vpack.c.bf16 %v2597, %v2595
    %v2626 = vpack.c.bf16 %v2600, %v2598
    %v2627 = vpack.c.bf16 %v2601, %v2599
    %v2628 = vpack.c.bf16 %v2602, %v2602
    %v2629 = vpack.c.bf16 %v2603, %v2603
    %v2630 = vld [vmem:[#allocation11] sm:$0xf]
    %v2631 = vld [vmem:[#allocation11 + $0x4] sm:$0xf]
    %v2632 = vld [vmem:[#allocation11 + $0x8] sm:$0xf]
    %v2633 = vld [vmem:[#allocation11 + $0xc] sm:$0xf]
    %v2634 = vld [vmem:[#allocation11 + $0x10] sm:$0xf]
    %v2635 = vld [vmem:[#allocation11 + $0x14] sm:$0xf]
    %v2636 = vld [vmem:[#allocation11 + $0x18] sm:$0xf]
    %v2637 = vld [vmem:[#allocation11 + $0x1c] sm:$0xf]
    %v2638 = vld [vmem:[#allocation11 + $0x20] sm:$0xf]
    %v2639 = vld [vmem:[#allocation11 + $0x24] sm:$0xf]
    %v2640 = vld [vmem:[#allocation11 + $0x28] sm:$0xf]
    %v2641 = vld [vmem:[#allocation11 + $0x2c] sm:$0xf]
    %v2642 = vld [vmem:[#allocation11 + $0x30] sm:$0xf]
    %v2643 = vld [vmem:[#allocation11 + $0x34] sm:$0xf]
    %v2644 = vld [vmem:[#allocation11 + $0x38] sm:$0xf]
    %v2645 = vld [vmem:[#allocation11 + $0x3c] sm:$0xf]
    %v2646 = vld [vmem:[#allocation11 + $0x40] sm:$0xf]
    %v2647 = vld [vmem:[#allocation11 + $0x44] sm:$0xf]
    %v2648 = vld [vmem:[#allocation11 + $0x48] sm:$0xf]
    %v2649 = vld [vmem:[#allocation11 + $0x4c] sm:$0xf]
    %v2650 = vld [vmem:[#allocation11 + $0x50] sm:$0xf]
    %v2651 = vld [vmem:[#allocation11 + $0x54] sm:$0xf]
    %v2652 = vld [vmem:[#allocation11 + $0x58] sm:$0xf]
    %v2653 = vld [vmem:[#allocation11 + $0x5c] sm:$0xf]
    %v2654 = vld [vmem:[#allocation11 + $0x60] sm:$0xf]
    %v2655 = vld [vmem:[#allocation11 + $0x64] sm:$0xf]
    %v2656 = vld [vmem:[#allocation11 + $0x68] sm:$0xf]
    %v2657 = vld [vmem:[#allocation11 + $0x6c] sm:$0xf]
    %v2658 = vld [vmem:[#allocation11 + $0x70] sm:$0xf]
    %v2659 = vld [vmem:[#allocation11 + $0x74] sm:$0xf]
    %v2660 = vld [vmem:[#allocation11 + $0x78] sm:$0xf]
    %v2661 = vld [vmem:[#allocation11 + $0x7c] sm:$0xf]
    %v2662 = vld [vmem:[%s6] sm:$0x1]
    %v2664 = vperm.slane %v2662, 0
    %v2698 = vunpack.c.l.b16 %v2630
    %v2699 = vunpack.c.l.b16 %v2631
    %v2700 = vunpack.c.l.b16 %v2632
    %v2701 = vunpack.c.l.b16 %v2633
    %v2702 = vunpack.c.l.b16 %v2634
    %v2703 = vunpack.c.l.b16 %v2635
    %v2704 = vunpack.c.l.b16 %v2636
    %v2705 = vunpack.c.l.b16 %v2637
    %v2706 = vunpack.c.l.b16 %v2638
    %v2707 = vunpack.c.l.b16 %v2639
    %v2708 = vunpack.c.l.b16 %v2640
    %v2709 = vunpack.c.l.b16 %v2641
    %v2710 = vunpack.c.l.b16 %v2642
    %v2711 = vunpack.c.l.b16 %v2643
    %v2712 = vunpack.c.l.b16 %v2644
    %v2713 = vunpack.c.l.b16 %v2645
    %v2714 = vunpack.c.l.b16 %v2646
    %v2715 = vunpack.c.l.b16 %v2647
    %v2716 = vunpack.c.l.b16 %v2648
    %v2717 = vunpack.c.l.b16 %v2649
    %v2718 = vunpack.c.l.b16 %v2650
    %v2719 = vunpack.c.l.b16 %v2651
    %v2720 = vunpack.c.l.b16 %v2652
    %v2721 = vunpack.c.l.b16 %v2653
    %v2722 = vunpack.c.l.b16 %v2654
    %v2723 = vunpack.c.l.b16 %v2655
    %v2724 = vunpack.c.l.b16 %v2656
    %v2725 = vunpack.c.l.b16 %v2657
    %v2726 = vunpack.c.l.b16 %v2658
    %v2727 = vunpack.c.l.b16 %v2659
    %v2728 = vunpack.c.l.b16 %v2660
    %v2729 = vunpack.c.l.b16 %v2661
    %v2730 = vpack.c.b16 %v2699, %v2698
    %v2731 = vpack.c.b16 %v2701, %v2700
    %v2732 = vpack.c.b16 %v2703, %v2702
    %v2733 = vpack.c.b16 %v2705, %v2704
    %v2734 = vpack.c.b16 %v2707, %v2706
    %v2735 = vpack.c.b16 %v2709, %v2708
    %v2736 = vpack.c.b16 %v2711, %v2710
    %v2737 = vpack.c.b16 %v2713, %v2712
    %v2738 = vpack.c.b16 %v2715, %v2714
    %v2739 = vpack.c.b16 %v2717, %v2716
    %v2740 = vpack.c.b16 %v2719, %v2718
    %v2741 = vpack.c.b16 %v2721, %v2720
    %v2742 = vpack.c.b16 %v2723, %v2722
    %v2743 = vpack.c.b16 %v2725, %v2724
    %v2744 = vpack.c.b16 %v2727, %v2726
    %v2745 = vpack.c.b16 %v2729, %v2728
    %2762 = vmatpush.bf16.msra.mxu0 %v2737
    %2763 = vmatpush.bf16.msra.mxu0 %v2736
    %2764 = vmatpush.bf16.msra.mxu0 %v2735
    %2765 = vmatpush.bf16.msra.mxu0 %v2734
    %2766 = vmatpush.bf16.msra.mxu0 %v2733
    %2767 = vmatpush.bf16.msra.mxu0 %v2732
    %2768 = vmatpush.bf16.msra.mxu0 %v2731
    %2769 = vmatpush.bf16.msra.mxu0 %v2730
    %2770 = vmatmul.bf16.gmra.mxu0 %v2604
    %v2771 = vpop.f32.mrf.mxu0
    %v2772 = vadd.f32 %v2664, %v2771
    %v2773 = vpop.f32.mrf.mxu0
    %v2774 = vadd.f32 %v2664, %v2773
    %2775 = vmatmul.bf16.gmra.mxu0 %v2606
    %v2776 = vpop.f32.mrf.mxu0
    %v2777 = vadd.f32 %v2664, %v2776
    %v2778 = vpop.f32.mrf.mxu0
    %v2779 = vadd.f32 %v2664, %v2778
    %2780 = vmatmul.bf16.gmra.mxu0 %v2608
    %v2781 = vpop.f32.mrf.mxu0
    %v2782 = vadd.f32 %v2664, %v2781
    %v2783 = vpop.f32.mrf.mxu0
    %v2784 = vadd.f32 %v2664, %v2783
    %2785 = vmatmul.bf16.gmra.mxu0 %v2610
    %v2786 = vpop.f32.mrf.mxu0
    %v2787 = vadd.f32 %v2664, %v2786
    %v2788 = vpop.f32.mrf.mxu0
    %v2789 = vadd.f32 %v2664, %v2788
    %2790 = vmatmul.bf16.gmra.mxu0 %v2612
    %v2791 = vpop.f32.mrf.mxu0
    %v2792 = vadd.f32 %v2664, %v2791
    %v2793 = vpop.f32.mrf.mxu0
    %v2794 = vadd.f32 %v2664, %v2793
    %2795 = vmatmul.bf16.gmra.mxu0 %v2614
    %v2796 = vpop.f32.mrf.mxu0
    %v2797 = vadd.f32 %v2664, %v2796
    %v2798 = vpop.f32.mrf.mxu0
    %v2799 = vadd.f32 %v2664, %v2798
    %2800 = vmatmul.bf16.gmra.mxu0 %v2616
    %v2801 = vpop.f32.mrf.mxu0
    %v2802 = vadd.f32 %v2664, %v2801
    %v2803 = vpop.f32.mrf.mxu0
    %v2804 = vadd.f32 %v2664, %v2803
    %2805 = vmatmul.bf16.gmra.mxu0 %v2618
    %v2806 = vpop.f32.mrf.mxu0
    %v2807 = vadd.f32 %v2664, %v2806
    %v2808 = vpop.f32.mrf.mxu0
    %v2809 = vadd.f32 %v2664, %v2808
    %2810 = vmatmul.bf16.gmra.mxu0 %v2620
    %v2811 = vpop.f32.mrf.mxu0
    %v2812 = vadd.f32 %v2664, %v2811
    %v2813 = vpop.f32.mrf.mxu0
    %v2814 = vadd.f32 %v2664, %v2813
    %2815 = vmatmul.bf16.gmra.mxu0 %v2622
    %v2816 = vpop.f32.mrf.mxu0
    %v2817 = vadd.f32 %v2664, %v2816
    %v2818 = vpop.f32.mrf.mxu0
    %v2819 = vadd.f32 %v2664, %v2818
    %2820 = vmatmul.bf16.gmra.mxu0 %v2624
    %v2821 = vpop.f32.mrf.mxu0
    %v2822 = vadd.f32 %v2664, %v2821
    %v2823 = vpop.f32.mrf.mxu0
    %v2824 = vadd.f32 %v2664, %v2823
    %2825 = vmatmul.bf16.gmra.mxu0 %v2626
    %v2826 = vpop.f32.mrf.mxu0
    %v2827 = vadd.f32 %v2664, %v2826
    %v2828 = vpop.f32.mrf.mxu0
    %v2829 = vadd.f32 %v2664, %v2828
    %2830 = vmatmul.bf16.gmra.mxu0 %v2628
    %v2831 = vpop.f32.mrf.mxu0
    %v2832 = vadd.f32 %v2664, %v2831
    %v2833 = vpop.f32.mrf.mxu0
    %2834 = vdwg.mxu0
    %2835 = vmatpush.bf16.msra.mxu0 %v2745
    %2836 = vmatpush.bf16.msra.mxu0 %v2744
    %2837 = vmatpush.bf16.msra.mxu0 %v2743
    %2838 = vmatpush.bf16.msra.mxu0 %v2742
    %2839 = vmatpush.bf16.msra.mxu0 %v2741
    %2840 = vmatpush.bf16.msra.mxu0 %v2740
    %2841 = vmatpush.bf16.msra.mxu0 %v2739
    %2842 = vmatpush.bf16.msra.mxu0 %v2738
    %2843 = vmatmul.bf16.gmra.mxu0 %v2605
    %v2844 = vpop.f32.mrf.mxu0
    %v2845 = vadd.f32 %v2772, %v2844
    %v2846 = vpop.f32.mrf.mxu0
    %v2847 = vadd.f32 %v2774, %v2846
    %2848 = vmatmul.bf16.gmra.mxu0 %v2607
    %v2849 = vpop.f32.mrf.mxu0
    %v2850 = vadd.f32 %v2777, %v2849
    %v2851 = vpop.f32.mrf.mxu0
    %v2852 = vadd.f32 %v2779, %v2851
    %2853 = vmatmul.bf16.gmra.mxu0 %v2609
    %v2854 = vpop.f32.mrf.mxu0
    %v2855 = vadd.f32 %v2782, %v2854
    %v2856 = vpop.f32.mrf.mxu0
    %v2857 = vadd.f32 %v2784, %v2856
    %2858 = vmatmul.bf16.gmra.mxu0 %v2611
    %v2859 = vpop.f32.mrf.mxu0
    %v2860 = vadd.f32 %v2787, %v2859
    %v2861 = vpop.f32.mrf.mxu0
    %v2862 = vadd.f32 %v2789, %v2861
    %2863 = vmatmul.bf16.gmra.mxu0 %v2613
    %v2864 = vpop.f32.mrf.mxu0
    %v2865 = vadd.f32 %v2792, %v2864
    %v2866 = vpop.f32.mrf.mxu0
    %v2867 = vadd.f32 %v2794, %v2866
    %2868 = vmatmul.bf16.gmra.mxu0 %v2615
    %v2869 = vpop.f32.mrf.mxu0
    %v2870 = vadd.f32 %v2797, %v2869
    %v2871 = vpop.f32.mrf.mxu0
    %v2872 = vadd.f32 %v2799, %v2871
    %2873 = vmatmul.bf16.gmra.mxu0 %v2617
    %v2874 = vpop.f32.mrf.mxu0
    %v2875 = vadd.f32 %v2802, %v2874
    %v2876 = vpop.f32.mrf.mxu0
    %v2877 = vadd.f32 %v2804, %v2876
    %2878 = vmatmul.bf16.gmra.mxu0 %v2619
    %v2879 = vpop.f32.mrf.mxu0
    %v2880 = vadd.f32 %v2807, %v2879
    %v2881 = vpop.f32.mrf.mxu0
    %v2882 = vadd.f32 %v2809, %v2881
    %2883 = vmatmul.bf16.gmra.mxu0 %v2621
    %v2884 = vpop.f32.mrf.mxu0
    %v2885 = vadd.f32 %v2812, %v2884
    %v2886 = vpop.f32.mrf.mxu0
    %v2887 = vadd.f32 %v2814, %v2886
    %2888 = vmatmul.bf16.gmra.mxu0 %v2623
    %v2889 = vpop.f32.mrf.mxu0
    %v2890 = vadd.f32 %v2817, %v2889
    %v2891 = vpop.f32.mrf.mxu0
    %v2892 = vadd.f32 %v2819, %v2891
    %2893 = vmatmul.bf16.gmra.mxu0 %v2625
    %v2894 = vpop.f32.mrf.mxu0
    %v2895 = vadd.f32 %v2822, %v2894
    %v2896 = vpop.f32.mrf.mxu0
    %v2897 = vadd.f32 %v2824, %v2896
    %2898 = vmatmul.bf16.gmra.mxu0 %v2627
    %v2899 = vpop.f32.mrf.mxu0
    %v2900 = vadd.f32 %v2827, %v2899
    %v2901 = vpop.f32.mrf.mxu0
    %v2902 = vadd.f32 %v2829, %v2901
    %2903 = vmatmul.bf16.gmra.mxu0 %v2629
    %v2904 = vpop.f32.mrf.mxu0
    %v2905 = vadd.f32 %v2832, %v2904
    %v2906 = vpop.f32.mrf.mxu0
    %2907 = vdwg.mxu0
    %2908 = vst [vmem:[#allocation13] sm:$0xff] %v2845
    %2909 = vst [vmem:[#allocation13 + $0x8] sm:$0xff] %v2847
    %2910 = vst [vmem:[#allocation13 + $0x10] sm:$0xff] %v2850
    %2911 = vst [vmem:[#allocation13 + $0x18] sm:$0xff] %v2852
    %2912 = vst [vmem:[#allocation13 + $0x20] sm:$0xff] %v2855
    %2913 = vst [vmem:[#allocation13 + $0x28] sm:$0xff] %v2857
    %2914 = vst [vmem:[#allocation13 + $0x30] sm:$0xff] %v2860
    %2915 = vst [vmem:[#allocation13 + $0x38] sm:$0xff] %v2862
    %2916 = vst [vmem:[#allocation13 + $0x40] sm:$0xff] %v2865
    %2917 = vst [vmem:[#allocation13 + $0x48] sm:$0xff] %v2867
    %2918 = vst [vmem:[#allocation13 + $0x50] sm:$0xff] %v2870
    %2919 = vst [vmem:[#allocation13 + $0x58] sm:$0xff] %v2872
    %2920 = vst [vmem:[#allocation13 + $0x60] sm:$0xff] %v2875
    %2921 = vst [vmem:[#allocation13 + $0x68] sm:$0xff] %v2877
    %2922 = vst [vmem:[#allocation13 + $0x70] sm:$0xff] %v2880
    %2923 = vst [vmem:[#allocation13 + $0x78] sm:$0xff] %v2882
    %2924 = vst [vmem:[#allocation13 + $0x80] sm:$0xff] %v2885
    %2925 = vst [vmem:[#allocation13 + $0x88] sm:$0xff] %v2887
    %2926 = vst [vmem:[#allocation13 + $0x90] sm:$0xff] %v2890
    %2927 = vst [vmem:[#allocation13 + $0x98] sm:$0xff] %v2892
    %2928 = vst [vmem:[#allocation13 + $0xa0] sm:$0xff] %v2895
    %2929 = vst [vmem:[#allocation13 + $0xa8] sm:$0xff] %v2897
    %2930 = vst [vmem:[#allocation13 + $0xb0] sm:$0xff] %v2900
    %2931 = vst [vmem:[#allocation13 + $0xb8] sm:$0xff] %v2902
    %2932 = vst [vmem:[#allocation13 + $0xc0] sm:$0xff] %v2905
    // Predicated region
    $region54: #{tpu_custom_call.1} parent=1 // pred_check
      _
    $region55: #{tpu_custom_call.1} parent=1 // pred_check_branch
      %2934 = sbr.rel (0) target = $region57
    $region56: #{tpu_custom_call.1} parent=1 // pred_region
      %2936 = vsyncadd [#allocation4], 0
      %s2937 = sshll.u32 [#allocation13], 4
      %s2938 = int_to_ptr.vmem [resolvable:$true] %s2937
      %s2939 = sshll.u32 %s7, 4
      %s2940 = int_to_ptr.hbm [resolvable:$true] %s2939
      %2945 = dma.vmem_to_hbm [thread:$0]  %s2938, 3200, %s2940, [#allocation4], 128, 128, 8
    $region57: #{tpu_custom_call.1} parent=1 // pred_fallthru
      _
    // Predicated region
    $region58: #{tpu_custom_call.1} parent=1 // pred_check
      _
    $region59: #{tpu_custom_call.1} parent=1 // pred_check_branch
      %2947 = sbr.rel (0) target = $region61
    $region60: #{tpu_custom_call.1} parent=1 // pred_region
      %2949 = dma.done [#allocation4], 3200
    $region61: #{tpu_custom_call.1} parent=1 // pred_fallthru
      _
    %2950 = vsyncpa [#allocation3], 1
    %2951 = vsyncpa [#allocation6], 1
    %2952 = vsyncpa [#allocation9], 1
    %2953 = vsyncpa [#allocation12], 1
    %2954 = vsyncpa [#allocation4], 1

</llo_original>
